<compile_context>
chip_gen: v6e
topology: v6e:2x2x1
jax: 0.10.0
libtpu: 0.0.40
codegen_flags: <defaults>
</compile_context>

<pallas_src>
import jax
import jax.numpy as jnp
from jax import lax
from jax.experimental import pallas as pl
from jax.experimental.pallas import tpu as pltpu


def _leaky_relu(x, slope=0.1):  # spec: F.leaky_relu(x, 0.1)
    return jnp.where(x > 0, x, slope * x)


def vgae_kernel(
    # SMEM inputs (indices & scalars)
    src_ref, dst_ref, batch_ref, eps_ref, invcnt_ref,
    # VMEM data
    x_ref, ea_ref, noise_ref,
    # conv1 params
    wn1_ref, bn1_ref, we1_ref, be1_ref, wa1_ref, ba1_ref, wb1_ref, bb1_ref,
    # conv2 params
    wn2_ref, bn2_ref, we2_ref, be2_ref, wa2_ref, ba2_ref, wb2_ref, bb2_ref,
    # heads
    wmu_ref, bmu_ref, wlv_ref, blv_ref, wcls_ref, bcls_ref,
    # outputs
    zml_out, logits_out,
    # scratch
    h_scr, emsg_scr, agg_scr, z_scr, gsum_scr,
):
    f32 = jnp.float32
    num_nodes = h_scr.shape[0]
    num_edges = emsg_scr.shape[0]
    ea = ea_ref[...]                                   # (E, EA)

    def gin_layer(h_proj, eps_idx, we, be, wa, ba, wb, bb):
        """OGB-style GIN conv on already-projected node features h_proj (N, H)."""
        # edge embedding for all edges at once (MXU)
        emsg_scr[...] = jnp.dot(ea, we[...], preferred_element_type=f32) + be[...]
        h_scr[...] = h_proj
        agg_scr[...] = jnp.zeros_like(agg_scr)

        # index-based gather + relu message + scatter-add (no one-hot matmuls)
        def edge_body(k, carry):
            s = src_ref[k]
            d = dst_ref[k]
            msg = jnp.maximum(h_scr[pl.ds(s, 1), :] + emsg_scr[pl.ds(k, 1), :], 0.0)
            agg_scr[pl.ds(d, 1), :] = agg_scr[pl.ds(d, 1), :] + msg
            return carry

        lax.fori_loop(0, num_edges, edge_body, 0)

        pre = (1.0 + eps_ref[eps_idx]) * h_proj + agg_scr[...]
        hid = jnp.maximum(jnp.dot(pre, wa[...], preferred_element_type=f32) + ba[...], 0.0)
        return jnp.dot(hid, wb[...], preferred_element_type=f32) + bb[...]

    # ---- conv1: in_dim == 1 -> VPU broadcast outer product instead of K=1 matmul
    h0 = x_ref[...] * wn1_ref[...] + bn1_ref[...]      # (N,1)*(1,H) -> (N,H)
    h1 = _leaky_relu(gin_layer(h0, 0, we1_ref, be1_ref, wa1_ref, ba1_ref, wb1_ref, bb1_ref))
    # dropout -> identity (eval)

    # ---- conv2
    h1p = jnp.dot(h1, wn2_ref[...], preferred_element_type=f32) + bn2_ref[...]
    h2 = _leaky_relu(gin_layer(h1p, 1, we2_ref, be2_ref, wa2_ref, ba2_ref, wb2_ref, bb2_ref))
    # dropout -> identity (eval)

    # ---- heads
    mu = jnp.dot(h2, wmu_ref[...], preferred_element_type=f32) + bmu_ref[...]      # (N, L)
    logvar = jnp.dot(h2, wlv_ref[...], preferred_element_type=f32) + blv_ref[...]  # (N, L)

    # reparameterize: z = mu + eps * exp(0.5 * logvar)
    z = mu + noise_ref[...] * jnp.exp(0.5 * logvar)
    z_scr[...] = z

    # single stacked output slab (one DMA instead of three small ones)
    zml_out[0, :, :] = z
    zml_out[1, :, :] = mu
    zml_out[2, :, :] = logvar

    # ---- global mean pool via index-based segment sum, normalized on the fly
    gsum_scr[...] = jnp.zeros_like(gsum_scr)

    def pool_body(n, carry):
        g = batch_ref[n]
        w = invcnt_ref[g]
        gsum_scr[pl.ds(g, 1), :] = gsum_scr[pl.ds(g, 1), :] + w * z_scr[pl.ds(n, 1), :]
        return carry

    lax.fori_loop(0, num_nodes, pool_body, 0)

    # dropout on graph embedding -> identity (eval); classifier
    logits_out[...] = (
        jnp.dot(gsum_scr[...], wcls_ref[...], preferred_element_type=f32) + bcls_ref[...]
    )


def init_params(key, in_dim, edge_attr_dim, hidden_dim, latent_dim, num_classes):
    """PyTorch-Linear-style init. Biases kept 2-D (1, F) for TPU lane layout."""
    def lin(k, fan_in, fan_out):
        kw, kb = jax.random.split(k)
        bound = 1.0 / jnp.sqrt(jnp.float32(fan_in))
        w = jax.random.uniform(kw, (fan_in, fan_out), jnp.float32, -bound, bound)
        b = jax.random.uniform(kb, (1, fan_out), jnp.float32, -bound, bound)
        return w, b

    ks = jax.random.split(key, 11)
    H, L = hidden_dim, latent_dim
    p = {}
    p["wn1"], p["bn1"] = lin(ks[0], in_dim, H)
    p["we1"], p["be1"] = lin(ks[1], edge_attr_dim, H)
    p["wa1"], p["ba1"] = lin(ks[2], H, 2 * H)
    p["wb1"], p["bb1"] = lin(ks[3], 2 * H, H)
    p["wn2"], p["bn2"] = lin(ks[4], H, H)
    p["we2"], p["be2"] = lin(ks[5], edge_attr_dim, H)
    p["wa2"], p["ba2"] = lin(ks[6], H, 2 * H)
    p["wb2"], p["bb2"] = lin(ks[7], 2 * H, H)
    p["wmu"], p["bmu"] = lin(ks[8], H, L)
    p["wlv"], p["blv"] = lin(ks[9], H, L)
    p["wcls"], p["bcls"] = lin(ks[10], L, num_classes)
    p["eps"] = jnp.zeros((2,), jnp.float32)   # GIN eps for conv1 / conv2 (SMEM scalars)
    return p


def vgae_forward(x, edge_index, edge_attr, batch, noise, params, num_graphs):
    """Glue: indices to SMEM, everything else VMEM, one fused Pallas kernel."""
    f32 = jnp.float32
    x2 = x.reshape((-1, 1)).astype(f32)                    # matches x.reshape((-1, 1))
    N = x2.shape[0]
    E = edge_index.shape[1]
    EA = edge_attr.shape[1]
    H = params["wn1"].shape[1]
    L = params["wmu"].shape[1]
    C = params["wcls"].shape[1]
    G = num_graphs

    src = edge_index[0].astype(jnp.int32)
    dst = edge_index[1].astype(jnp.int32)
    batch = batch.astype(jnp.int32)
    counts = jnp.zeros((G,), f32).at[batch].add(1.0)       # nodes per graph
    inv_counts = 1.0 / jnp.maximum(counts, 1.0)

    p = params
    smem_args = (src, dst, batch, p["eps"], inv_counts)
    vmem_args = (
        x2, edge_attr.astype(f32), noise.astype(f32),
        p["wn1"], p["bn1"], p["we1"], p["be1"], p["wa1"], p["ba1"], p["wb1"], p["bb1"],
        p["wn2"], p["bn2"], p["we2"], p["be2"], p["wa2"], p["ba2"], p["wb2"], p["bb2"],
        p["wmu"], p["bmu"], p["wlv"], p["blv"], p["wcls"], p["bcls"],
    )
    args = smem_args + vmem_args

    smem = pl.BlockSpec(memory_space=pltpu.MemorySpace.SMEM)
    vmem = pl.BlockSpec(memory_space=pltpu.MemorySpace.VMEM)

    out_shape = (
        jax.ShapeDtypeStruct((3, N, L), f32),              # stacked [z, mu, logvar]
        jax.ShapeDtypeStruct((G, C), f32),                 # class logits
    )

    flops = int(
        2 * N * H                                          # conv1 broadcast projection
        + 2 * (2 * E * EA * H)                             # edge encoders (2 layers)
        + 2 * (2 * E * H)                                  # messages: add + relu
        + 2 * N * H * H                                    # conv2 node projection
        + 2 * (2 * N * H * 2 * H + 2 * N * 2 * H * H)      # two GIN MLPs
        + 2 * (2 * N * H * L)                              # mu + logvar heads
        + 4 * N * L                                        # reparameterize + pooling
        + 2 * G * L * C                                    # classifier
    )
    bytes_accessed = int(4 * (sum(int(a.size) for a in args) + 3 * N * L + G * C))

    fwd = pl.pallas_call(
        vgae_kernel,
        out_shape=out_shape,
        in_specs=[smem] * len(smem_args) + [vmem] * len(vmem_args),
        out_specs=(vmem, vmem),
        scratch_shapes=[
            pltpu.VMEM((N, H), f32),     # h_scr: projected node features
            pltpu.VMEM((E, H), f32),     # emsg_scr: edge embeddings / messages
            pltpu.VMEM((N, H), f32),     # agg_scr: scatter-add accumulator
            pltpu.VMEM((N, L), f32),     # z_scr: latent samples (for pooling)
            pltpu.VMEM((G, L), f32),     # gsum_scr: per-graph mean accumulator
        ],
        compiler_params=pltpu.CompilerParams(vmem_limit_bytes=32 * 1024 * 1024),
        cost_estimate=pl.CostEstimate(
            flops=flops, transcendentals=int(N * L), bytes_accessed=bytes_accessed),
    )
    zml, class_logits = fwd(*args)
    z, mu, logvar = zml[0], zml[1], zml[2]
    return z, mu, logvar, class_logits


if __name__ == "__main__":
    # Small, deterministic synthetic graph batch.
    N, E, G = 16, 32, 2          # nodes, edges, graphs
    IN, EA, H, L, C = 1, 4, 32, 8, 3

    key = jax.random.PRNGKey(0)
    k_x, k_ei, k_ea, k_noise, k_par = jax.random.split(key, 5)

    x = jax.random.normal(k_x, (N,), jnp.float32)                     # data.x (flat node scalar)
    edge_index = jax.random.randint(k_ei, (2, E), 0, N, jnp.int32)    # data.edge_index
    edge_attr = jax.random.normal(k_ea, (E, EA), jnp.float32)         # data.edge_attr
    batch = jnp.repeat(jnp.arange(G, dtype=jnp.int32), N // G)        # data.batch
    noise = jax.random.normal(k_noise, (N, L), jnp.float32)           # eps for reparameterize

    params = init_params(k_par, IN, EA, H, L, C)

    z, mu, logvar, class_logits = vgae_forward(x, edge_index, edge_attr, batch, noise, params, G)
    jax.block_until_ready((z, mu, logvar, class_logits))

    assert z.shape == (N, L) and mu.shape == (N, L) and logvar.shape == (N, L)
    assert class_logits.shape == (G, C)
    print("KERNEL_OK")
</pallas_src>

<mosaic_0001>
module attributes {stable_mosaic.version = 11 : i64} {
  func.func @vgae_kernel(%arg0: memref<32xi32, #tpu.memory_space<smem>>, %arg1: memref<32xi32, #tpu.memory_space<smem>>, %arg2: memref<16xi32, #tpu.memory_space<smem>>, %arg3: memref<2xf32, #tpu.memory_space<smem>>, %arg4: memref<2xf32, #tpu.memory_space<smem>>, %arg5: memref<16x1xf32, #tpu.memory_space<vmem>>, %arg6: memref<32x4xf32, #tpu.memory_space<vmem>>, %arg7: memref<16x8xf32, #tpu.memory_space<vmem>>, %arg8: memref<1x32xf32, #tpu.memory_space<vmem>>, %arg9: memref<1x32xf32, #tpu.memory_space<vmem>>, %arg10: memref<4x32xf32, #tpu.memory_space<vmem>>, %arg11: memref<1x32xf32, #tpu.memory_space<vmem>>, %arg12: memref<32x64xf32, #tpu.memory_space<vmem>>, %arg13: memref<1x64xf32, #tpu.memory_space<vmem>>, %arg14: memref<64x32xf32, #tpu.memory_space<vmem>>, %arg15: memref<1x32xf32, #tpu.memory_space<vmem>>, %arg16: memref<32x32xf32, #tpu.memory_space<vmem>>, %arg17: memref<1x32xf32, #tpu.memory_space<vmem>>, %arg18: memref<4x32xf32, #tpu.memory_space<vmem>>, %arg19: memref<1x32xf32, #tpu.memory_space<vmem>>, %arg20: memref<32x64xf32, #tpu.memory_space<vmem>>, %arg21: memref<1x64xf32, #tpu.memory_space<vmem>>, %arg22: memref<64x32xf32, #tpu.memory_space<vmem>>, %arg23: memref<1x32xf32, #tpu.memory_space<vmem>>, %arg24: memref<32x8xf32, #tpu.memory_space<vmem>>, %arg25: memref<1x8xf32, #tpu.memory_space<vmem>>, %arg26: memref<32x8xf32, #tpu.memory_space<vmem>>, %arg27: memref<1x8xf32, #tpu.memory_space<vmem>>, %arg28: memref<8x3xf32, #tpu.memory_space<vmem>>, %arg29: memref<1x3xf32, #tpu.memory_space<vmem>>, %arg30: memref<3x16x8xf32, #tpu.memory_space<vmem>>, %arg31: memref<2x3xf32, #tpu.memory_space<vmem>>, %arg32: memref<16x32xf32, #tpu.memory_space<vmem>>, %arg33: memref<32x32xf32, #tpu.memory_space<vmem>>, %arg34: memref<16x32xf32, #tpu.memory_space<vmem>>, %arg35: memref<16x8xf32, #tpu.memory_space<vmem>>, %arg36: memref<2x8xf32, #tpu.memory_space<vmem>>) attributes {dimension_semantics = [], scalar_prefetch = 0 : i64, scratch_operands = 5 : i64, tpu.core_type = #tpu.core_type<tc>} {
    %c0 = arith.constant 0 : index
    %c0_0 = arith.constant 0 : index
    %0 = vector.load %arg6[%c0, %c0_0] : memref<32x4xf32, #tpu.memory_space<vmem>>, vector<32x4xf32>
    %c0_1 = arith.constant 0 : index
    %c0_2 = arith.constant 0 : index
    %1 = vector.load %arg5[%c0_1, %c0_2] : memref<16x1xf32, #tpu.memory_space<vmem>>, vector<16x1xf32>
    %c0_3 = arith.constant 0 : index
    %c0_4 = arith.constant 0 : index
    %2 = vector.load %arg8[%c0_3, %c0_4] : memref<1x32xf32, #tpu.memory_space<vmem>>, vector<1x32xf32>
    %3 = vector.broadcast %1 : vector<16x1xf32> to vector<16x32xf32>
    %4 = vector.broadcast %2 : vector<1x32xf32> to vector<16x32xf32>
    %5 = arith.mulf %3, %4 : vector<16x32xf32>
    %c0_5 = arith.constant 0 : index
    %c0_6 = arith.constant 0 : index
    %6 = vector.load %arg9[%c0_5, %c0_6] : memref<1x32xf32, #tpu.memory_space<vmem>>, vector<1x32xf32>
    %7 = vector.broadcast %6 : vector<1x32xf32> to vector<16x32xf32>
    %8 = arith.addf %5, %7 : vector<16x32xf32>
    %c0_7 = arith.constant 0 : index
    %c0_8 = arith.constant 0 : index
    %9 = vector.load %arg10[%c0_7, %c0_8] : memref<4x32xf32, #tpu.memory_space<vmem>>, vector<4x32xf32>
    %cst = arith.constant dense<0.000000e+00> : vector<32x32xf32>
    %10 = tpu.matmul %0, %9, %cst {dimension_numbers = #tpu.dot_dimension_numbers<[1], [0], [0], [1], [0, 0, 1, 1], [], []>} : vector<32x4xf32>, vector<4x32xf32>, vector<32x32xf32> -> vector<32x32xf32>
    %c0_9 = arith.constant 0 : index
    %c0_10 = arith.constant 0 : index
    %11 = vector.load %arg11[%c0_9, %c0_10] : memref<1x32xf32, #tpu.memory_space<vmem>>, vector<1x32xf32>
    %12 = vector.broadcast %11 : vector<1x32xf32> to vector<32x32xf32>
    %13 = arith.addf %10, %12 : vector<32x32xf32>
    %c0_11 = arith.constant 0 : index
    %c0_12 = arith.constant 0 : index
    %14 = vector.load %arg33[%c0_11, %c0_12] : memref<32x32xf32, #tpu.memory_space<vmem>>, vector<32x32xf32>
    tpu.vector_store %arg33[%c0_11, %c0_12], %13 {strides = array<i32>} : memref<32x32xf32, #tpu.memory_space<vmem>>, vector<32x32xf32>,
    %c0_13 = arith.constant 0 : index
    %c0_14 = arith.constant 0 : index
    %15 = vector.load %arg32[%c0_13, %c0_14] : memref<16x32xf32, #tpu.memory_space<vmem>>, vector<16x32xf32>
    tpu.vector_store %arg32[%c0_13, %c0_14], %8 {strides = array<i32>} : memref<16x32xf32, #tpu.memory_space<vmem>>, vector<16x32xf32>,
    %cst_15 = arith.constant 0.000000e+00 : f32
    %16 = vector.broadcast %cst_15 : f32 to vector<16x32xf32>
    %c0_16 = arith.constant 0 : index
    %c0_17 = arith.constant 0 : index
    %17 = vector.load %arg34[%c0_16, %c0_17] : memref<16x32xf32, #tpu.memory_space<vmem>>, vector<16x32xf32>
    tpu.vector_store %arg34[%c0_16, %c0_17], %16 {strides = array<i32>} : memref<16x32xf32, #tpu.memory_space<vmem>>, vector<16x32xf32>,
    %c0_i32 = arith.constant 0 : i32
    %c32_i32 = arith.constant 32 : i32
    %18 = arith.addi %c0_i32, %c32_i32 : i32
    %c1_i32 = arith.constant 1 : i32
    scf.for %arg37 = %c0_i32 to %18 step %c1_i32  : i32 {
      %116 = arith.index_cast %arg37 : i32 to index
      %117 = memref.load %arg0[%116] : memref<32xi32, #tpu.memory_space<smem>>
      %118 = arith.index_cast %arg37 : i32 to index
      %119 = memref.load %arg1[%118] : memref<32xi32, #tpu.memory_space<smem>>
      %120 = arith.index_cast %117 : i32 to index
      %c0_111 = arith.constant 0 : index
      %121 = vector.load %arg32[%120, %c0_111] : memref<16x32xf32, #tpu.memory_space<vmem>>, vector<1x32xf32>
      %122 = arith.index_cast %arg37 : i32 to index
      %c0_112 = arith.constant 0 : index
      %123 = vector.load %arg33[%122, %c0_112] : memref<32x32xf32, #tpu.memory_space<vmem>>, vector<1x32xf32>
      %124 = arith.addf %121, %123 : vector<1x32xf32>
      %cst_113 = arith.constant 0.000000e+00 : f32
      %125 = vector.broadcast %cst_113 : f32 to vector<1x32xf32>
      %126 = arith.maximumf %124, %125 : vector<1x32xf32>
      %127 = arith.index_cast %119 : i32 to index
      %c0_114 = arith.constant 0 : index
      %128 = vector.load %arg34[%127, %c0_114] : memref<16x32xf32, #tpu.memory_space<vmem>>, vector<1x32xf32>
      %129 = arith.addf %128, %126 : vector<1x32xf32>
      %130 = arith.index_cast %119 : i32 to index
      %c0_115 = arith.constant 0 : index
      %131 = vector.load %arg34[%130, %c0_115] : memref<16x32xf32, #tpu.memory_space<vmem>>, vector<1x32xf32>
      tpu.vector_store %arg34[%130, %c0_115], %129 {strides = array<i32>} : memref<16x32xf32, #tpu.memory_space<vmem>>, vector<1x32xf32>,
    }
    %c32_i32_18 = arith.constant 32 : i32
    %c0_19 = arith.constant 0 : index
    %19 = memref.load %arg3[%c0_19] : memref<2xf32, #tpu.memory_space<smem>>
    %cst_20 = arith.constant 1.000000e+00 : f32
    %20 = arith.addf %cst_20, %19 : f32
    %21 = vector.broadcast %20 : f32 to vector<16x32xf32>
    %22 = arith.mulf %21, %8 : vector<16x32xf32>
    %c0_21 = arith.constant 0 : index
    %c0_22 = arith.constant 0 : index
    %23 = vector.load %arg34[%c0_21, %c0_22] : memref<16x32xf32, #tpu.memory_space<vmem>>, vector<16x32xf32>
    %24 = arith.addf %22, %23 : vector<16x32xf32>
    %c0_23 = arith.constant 0 : index
    %c0_24 = arith.constant 0 : index
    %25 = vector.load %arg12[%c0_23, %c0_24] : memref<32x64xf32, #tpu.memory_space<vmem>>, vector<32x64xf32>
    %cst_25 = arith.constant dense<0.000000e+00> : vector<16x64xf32>
    %26 = tpu.matmul %24, %25, %cst_25 {dimension_numbers = #tpu.dot_dimension_numbers<[1], [0], [0], [1], [0, 0, 1, 1], [], []>} : vector<16x32xf32>, vector<32x64xf32>, vector<16x64xf32> -> vector<16x64xf32>
    %c0_26 = arith.constant 0 : index
    %c0_27 = arith.constant 0 : index
    %27 = vector.load %arg13[%c0_26, %c0_27] : memref<1x64xf32, #tpu.memory_space<vmem>>, vector<1x64xf32>
    %28 = vector.broadcast %27 : vector<1x64xf32> to vector<16x64xf32>
    %29 = arith.addf %26, %28 : vector<16x64xf32>
    %cst_28 = arith.constant 0.000000e+00 : f32
    %30 = vector.broadcast %cst_28 : f32 to vector<16x64xf32>
    %31 = arith.maximumf %29, %30 : vector<16x64xf32>
    %c0_29 = arith.constant 0 : index
    %c0_30 = arith.constant 0 : index
    %32 = vector.load %arg14[%c0_29, %c0_30] : memref<64x32xf32, #tpu.memory_space<vmem>>, vector<64x32xf32>
    %cst_31 = arith.constant dense<0.000000e+00> : vector<16x32xf32>
    %33 = tpu.matmul %31, %32, %cst_31 {dimension_numbers = #tpu.dot_dimension_numbers<[1], [0], [0], [1], [0, 0, 1, 1], [], []>} : vector<16x64xf32>, vector<64x32xf32>, vector<16x32xf32> -> vector<16x32xf32>
    %c0_32 = arith.constant 0 : index
    %c0_33 = arith.constant 0 : index
    %34 = vector.load %arg15[%c0_32, %c0_33] : memref<1x32xf32, #tpu.memory_space<vmem>>, vector<1x32xf32>
    %35 = vector.broadcast %34 : vector<1x32xf32> to vector<16x32xf32>
    %36 = arith.addf %33, %35 : vector<16x32xf32>
    %cst_34 = arith.constant 0.000000e+00 : f32
    %37 = vector.broadcast %cst_34 : f32 to vector<16x32xf32>
    %38 = arith.cmpf ogt, %36, %37 : vector<16x32xf32>
    %cst_35 = arith.constant 1.000000e-01 : f32
    %39 = vector.broadcast %cst_35 : f32 to vector<16x32xf32>
    %40 = arith.mulf %39, %36 : vector<16x32xf32>
    %41 = arith.select %38, %36, %40 : vector<16x32xi1>, vector<16x32xf32>
    %c0_36 = arith.constant 0 : index
    %c0_37 = arith.constant 0 : index
    %42 = vector.load %arg16[%c0_36, %c0_37] : memref<32x32xf32, #tpu.memory_space<vmem>>, vector<32x32xf32>
    %cst_38 = arith.constant dense<0.000000e+00> : vector<16x32xf32>
    %43 = tpu.matmul %41, %42, %cst_38 {dimension_numbers = #tpu.dot_dimension_numbers<[1], [0], [0], [1], [0, 0, 1, 1], [], []>} : vector<16x32xf32>, vector<32x32xf32>, vector<16x32xf32> -> vector<16x32xf32>
    %c0_39 = arith.constant 0 : index
    %c0_40 = arith.constant 0 : index
    %44 = vector.load %arg17[%c0_39, %c0_40] : memref<1x32xf32, #tpu.memory_space<vmem>>, vector<1x32xf32>
    %45 = vector.broadcast %44 : vector<1x32xf32> to vector<16x32xf32>
    %46 = arith.addf %43, %45 : vector<16x32xf32>
    %c0_41 = arith.constant 0 : index
    %c0_42 = arith.constant 0 : index
    %47 = vector.load %arg18[%c0_41, %c0_42] : memref<4x32xf32, #tpu.memory_space<vmem>>, vector<4x32xf32>
    %cst_43 = arith.constant dense<0.000000e+00> : vector<32x32xf32>
    %48 = tpu.matmul %0, %47, %cst_43 {dimension_numbers = #tpu.dot_dimension_numbers<[1], [0], [0], [1], [0, 0, 1, 1], [], []>} : vector<32x4xf32>, vector<4x32xf32>, vector<32x32xf32> -> vector<32x32xf32>
    %c0_44 = arith.constant 0 : index
    %c0_45 = arith.constant 0 : index
    %49 = vector.load %arg19[%c0_44, %c0_45] : memref<1x32xf32, #tpu.memory_space<vmem>>, vector<1x32xf32>
    %50 = vector.broadcast %49 : vector<1x32xf32> to vector<32x32xf32>
    %51 = arith.addf %48, %50 : vector<32x32xf32>
    %c0_46 = arith.constant 0 : index
    %c0_47 = arith.constant 0 : index
    %52 = vector.load %arg33[%c0_46, %c0_47] : memref<32x32xf32, #tpu.memory_space<vmem>>, vector<32x32xf32>
    tpu.vector_store %arg33[%c0_46, %c0_47], %51 {strides = array<i32>} : memref<32x32xf32, #tpu.memory_space<vmem>>, vector<32x32xf32>,
    %c0_48 = arith.constant 0 : index
    %c0_49 = arith.constant 0 : index
    %53 = vector.load %arg32[%c0_48, %c0_49] : memref<16x32xf32, #tpu.memory_space<vmem>>, vector<16x32xf32>
    tpu.vector_store %arg32[%c0_48, %c0_49], %46 {strides = array<i32>} : memref<16x32xf32, #tpu.memory_space<vmem>>, vector<16x32xf32>,
    %cst_50 = arith.constant 0.000000e+00 : f32
    %54 = vector.broadcast %cst_50 : f32 to vector<16x32xf32>
    %c0_51 = arith.constant 0 : index
    %c0_52 = arith.constant 0 : index
    %55 = vector.load %arg34[%c0_51, %c0_52] : memref<16x32xf32, #tpu.memory_space<vmem>>, vector<16x32xf32>
    tpu.vector_store %arg34[%c0_51, %c0_52], %54 {strides = array<i32>} : memref<16x32xf32, #tpu.memory_space<vmem>>, vector<16x32xf32>,
    %c0_i32_53 = arith.constant 0 : i32
    %c32_i32_54 = arith.constant 32 : i32
    %56 = arith.addi %c0_i32_53, %c32_i32_54 : i32
    %c1_i32_55 = arith.constant 1 : i32
    scf.for %arg37 = %c0_i32_53 to %56 step %c1_i32_55  : i32 {
      %116 = arith.index_cast %arg37 : i32 to index
      %117 = memref.load %arg0[%116] : memref<32xi32, #tpu.memory_space<smem>>
      %118 = arith.index_cast %arg37 : i32 to index
      %119 = memref.load %arg1[%118] : memref<32xi32, #tpu.memory_space<smem>>
      %120 = arith.index_cast %117 : i32 to index
      %c0_111 = arith.constant 0 : index
      %121 = vector.load %arg32[%120, %c0_111] : memref<16x32xf32, #tpu.memory_space<vmem>>, vector<1x32xf32>
      %122 = arith.index_cast %arg37 : i32 to index
      %c0_112 = arith.constant 0 : index
      %123 = vector.load %arg33[%122, %c0_112] : memref<32x32xf32, #tpu.memory_space<vmem>>, vector<1x32xf32>
      %124 = arith.addf %121, %123 : vector<1x32xf32>
      %cst_113 = arith.constant 0.000000e+00 : f32
      %125 = vector.broadcast %cst_113 : f32 to vector<1x32xf32>
      %126 = arith.maximumf %124, %125 : vector<1x32xf32>
      %127 = arith.index_cast %119 : i32 to index
      %c0_114 = arith.constant 0 : index
      %128 = vector.load %arg34[%127, %c0_114] : memref<16x32xf32, #tpu.memory_space<vmem>>, vector<1x32xf32>
      %129 = arith.addf %128, %126 : vector<1x32xf32>
      %130 = arith.index_cast %119 : i32 to index
      %c0_115 = arith.constant 0 : index
      %131 = vector.load %arg34[%130, %c0_115] : memref<16x32xf32, #tpu.memory_space<vmem>>, vector<1x32xf32>
      tpu.vector_store %arg34[%130, %c0_115], %129 {strides = array<i32>} : memref<16x32xf32, #tpu.memory_space<vmem>>, vector<1x32xf32>,
    }
    %c32_i32_56 = arith.constant 32 : i32
    %c1 = arith.constant 1 : index
    %57 = memref.load %arg3[%c1] : memref<2xf32, #tpu.memory_space<smem>>
    %cst_57 = arith.constant 1.000000e+00 : f32
    %58 = arith.addf %cst_57, %57 : f32
    %59 = vector.broadcast %58 : f32 to vector<16x32xf32>
    %60 = arith.mulf %59, %46 : vector<16x32xf32>
    %c0_58 = arith.constant 0 : index
    %c0_59 = arith.constant 0 : index
    %61 = vector.load %arg34[%c0_58, %c0_59] : memref<16x32xf32, #tpu.memory_space<vmem>>, vector<16x32xf32>
    %62 = arith.addf %60, %61 : vector<16x32xf32>
    %c0_60 = arith.constant 0 : index
    %c0_61 = arith.constant 0 : index
    %63 = vector.load %arg20[%c0_60, %c0_61] : memref<32x64xf32, #tpu.memory_space<vmem>>, vector<32x64xf32>
    %cst_62 = arith.constant dense<0.000000e+00> : vector<16x64xf32>
    %64 = tpu.matmul %62, %63, %cst_62 {dimension_numbers = #tpu.dot_dimension_numbers<[1], [0], [0], [1], [0, 0, 1, 1], [], []>} : vector<16x32xf32>, vector<32x64xf32>, vector<16x64xf32> -> vector<16x64xf32>
    %c0_63 = arith.constant 0 : index
    %c0_64 = arith.constant 0 : index
    %65 = vector.load %arg21[%c0_63, %c0_64] : memref<1x64xf32, #tpu.memory_space<vmem>>, vector<1x64xf32>
    %66 = vector.broadcast %65 : vector<1x64xf32> to vector<16x64xf32>
    %67 = arith.addf %64, %66 : vector<16x64xf32>
    %cst_65 = arith.constant 0.000000e+00 : f32
    %68 = vector.broadcast %cst_65 : f32 to vector<16x64xf32>
    %69 = arith.maximumf %67, %68 : vector<16x64xf32>
    %c0_66 = arith.constant 0 : index
    %c0_67 = arith.constant 0 : index
    %70 = vector.load %arg22[%c0_66, %c0_67] : memref<64x32xf32, #tpu.memory_space<vmem>>, vector<64x32xf32>
    %cst_68 = arith.constant dense<0.000000e+00> : vector<16x32xf32>
    %71 = tpu.matmul %69, %70, %cst_68 {dimension_numbers = #tpu.dot_dimension_numbers<[1], [0], [0], [1], [0, 0, 1, 1], [], []>} : vector<16x64xf32>, vector<64x32xf32>, vector<16x32xf32> -> vector<16x32xf32>
    %c0_69 = arith.constant 0 : index
    %c0_70 = arith.constant 0 : index
    %72 = vector.load %arg23[%c0_69, %c0_70] : memref<1x32xf32, #tpu.memory_space<vmem>>, vector<1x32xf32>
    %73 = vector.broadcast %72 : vector<1x32xf32> to vector<16x32xf32>
    %74 = arith.addf %71, %73 : vector<16x32xf32>
    %cst_71 = arith.constant 0.000000e+00 : f32
    %75 = vector.broadcast %cst_71 : f32 to vector<16x32xf32>
    %76 = arith.cmpf ogt, %74, %75 : vector<16x32xf32>
    %cst_72 = arith.constant 1.000000e-01 : f32
    %77 = vector.broadcast %cst_72 : f32 to vector<16x32xf32>
    %78 = arith.mulf %77, %74 : vector<16x32xf32>
    %79 = arith.select %76, %74, %78 : vector<16x32xi1>, vector<16x32xf32>
    %c0_73 = arith.constant 0 : index
    %c0_74 = arith.constant 0 : index
    %80 = vector.load %arg24[%c0_73, %c0_74] : memref<32x8xf32, #tpu.memory_space<vmem>>, vector<32x8xf32>
    %cst_75 = arith.constant dense<0.000000e+00> : vector<16x8xf32>
    %81 = tpu.matmul %79, %80, %cst_75 {dimension_numbers = #tpu.dot_dimension_numbers<[1], [0], [0], [1], [0, 0, 1, 1], [], []>} : vector<16x32xf32>, vector<32x8xf32>, vector<16x8xf32> -> vector<16x8xf32>
    %c0_76 = arith.constant 0 : index
    %c0_77 = arith.constant 0 : index
    %82 = vector.load %arg25[%c0_76, %c0_77] : memref<1x8xf32, #tpu.memory_space<vmem>>, vector<1x8xf32>
    %83 = vector.broadcast %82 : vector<1x8xf32> to vector<16x8xf32>
    %84 = arith.addf %81, %83 : vector<16x8xf32>
    %c0_78 = arith.constant 0 : index
    %c0_79 = arith.constant 0 : index
    %85 = vector.load %arg26[%c0_78, %c0_79] : memref<32x8xf32, #tpu.memory_space<vmem>>, vector<32x8xf32>
    %cst_80 = arith.constant dense<0.000000e+00> : vector<16x8xf32>
    %86 = tpu.matmul %79, %85, %cst_80 {dimension_numbers = #tpu.dot_dimension_numbers<[1], [0], [0], [1], [0, 0, 1, 1], [], []>} : vector<16x32xf32>, vector<32x8xf32>, vector<16x8xf32> -> vector<16x8xf32>
    %c0_81 = arith.constant 0 : index
    %c0_82 = arith.constant 0 : index
    %87 = vector.load %arg27[%c0_81, %c0_82] : memref<1x8xf32, #tpu.memory_space<vmem>>, vector<1x8xf32>
    %88 = vector.broadcast %87 : vector<1x8xf32> to vector<16x8xf32>
    %89 = arith.addf %86, %88 : vector<16x8xf32>
    %c0_83 = arith.constant 0 : index
    %c0_84 = arith.constant 0 : index
    %90 = vector.load %arg7[%c0_83, %c0_84] : memref<16x8xf32, #tpu.memory_space<vmem>>, vector<16x8xf32>
    %cst_85 = arith.constant 5.000000e-01 : f32
    %91 = vector.broadcast %cst_85 : f32 to vector<16x8xf32>
    %92 = arith.mulf %91, %89 : vector<16x8xf32>
    %93 = math.exp %92 : vector<16x8xf32>
    %94 = arith.mulf %90, %93 : vector<16x8xf32>
    %95 = arith.addf %84, %94 : vector<16x8xf32>
    %c0_86 = arith.constant 0 : index
    %c0_87 = arith.constant 0 : index
    %96 = vector.load %arg35[%c0_86, %c0_87] : memref<16x8xf32, #tpu.memory_space<vmem>>, vector<16x8xf32>
    tpu.vector_store %arg35[%c0_86, %c0_87], %95 {strides = array<i32>} : memref<16x8xf32, #tpu.memory_space<vmem>>, vector<16x8xf32>,
    %c0_88 = arith.constant 0 : index
    %c0_89 = arith.constant 0 : index
    %c0_90 = arith.constant 0 : index
    %97 = vector.load %arg30[%c0_88, %c0_89, %c0_90] : memref<3x16x8xf32, #tpu.memory_space<vmem>>, vector<1x16x8xf32>
    %98 = vector.shape_cast %97 : vector<1x16x8xf32> to vector<16x8xf32>
    %99 = vector.shape_cast %95 : vector<16x8xf32> to vector<1x16x8xf32>
    tpu.vector_store %arg30[%c0_88, %c0_89, %c0_90], %99 {strides = array<i32>} : memref<3x16x8xf32, #tpu.memory_space<vmem>>, vector<1x16x8xf32>,
    %c1_91 = arith.constant 1 : index
    %c0_92 = arith.constant 0 : index
    %c0_93 = arith.constant 0 : index
    %100 = vector.load %arg30[%c1_91, %c0_92, %c0_93] : memref<3x16x8xf32, #tpu.memory_space<vmem>>, vector<1x16x8xf32>
    %101 = vector.shape_cast %100 : vector<1x16x8xf32> to vector<16x8xf32>
    %102 = vector.shape_cast %84 : vector<16x8xf32> to vector<1x16x8xf32>
    tpu.vector_store %arg30[%c1_91, %c0_92, %c0_93], %102 {strides = array<i32>} : memref<3x16x8xf32, #tpu.memory_space<vmem>>, vector<1x16x8xf32>,
    %c2 = arith.constant 2 : index
    %c0_94 = arith.constant 0 : index
    %c0_95 = arith.constant 0 : index
    %103 = vector.load %arg30[%c2, %c0_94, %c0_95] : memref<3x16x8xf32, #tpu.memory_space<vmem>>, vector<1x16x8xf32>
    %104 = vector.shape_cast %103 : vector<1x16x8xf32> to vector<16x8xf32>
    %105 = vector.shape_cast %89 : vector<16x8xf32> to vector<1x16x8xf32>
    tpu.vector_store %arg30[%c2, %c0_94, %c0_95], %105 {strides = array<i32>} : memref<3x16x8xf32, #tpu.memory_space<vmem>>, vector<1x16x8xf32>,
    %cst_96 = arith.constant 0.000000e+00 : f32
    %106 = vector.broadcast %cst_96 : f32 to vector<2x8xf32>
    %c0_97 = arith.constant 0 : index
    %c0_98 = arith.constant 0 : index
    %107 = vector.load %arg36[%c0_97, %c0_98] : memref<2x8xf32, #tpu.memory_space<vmem>>, vector<2x8xf32>
    tpu.vector_store %arg36[%c0_97, %c0_98], %106 {strides = array<i32>} : memref<2x8xf32, #tpu.memory_space<vmem>>, vector<2x8xf32>,
    %c0_i32_99 = arith.constant 0 : i32
    %c16_i32 = arith.constant 16 : i32
    %108 = arith.addi %c0_i32_99, %c16_i32 : i32
    %c1_i32_100 = arith.constant 1 : i32
    scf.for %arg37 = %c0_i32_99 to %108 step %c1_i32_100  : i32 {
      %116 = arith.index_cast %arg37 : i32 to index
      %117 = memref.load %arg2[%116] : memref<16xi32, #tpu.memory_space<smem>>
      %118 = arith.index_cast %117 : i32 to index
      %119 = memref.load %arg4[%118] : memref<2xf32, #tpu.memory_space<smem>>
      %120 = arith.index_cast %117 : i32 to index
      %c0_111 = arith.constant 0 : index
      %121 = vector.load %arg36[%120, %c0_111] : memref<2x8xf32, #tpu.memory_space<vmem>>, vector<1x8xf32>
      %122 = arith.index_cast %arg37 : i32 to index
      %c0_112 = arith.constant 0 : index
      %123 = vector.load %arg35[%122, %c0_112] : memref<16x8xf32, #tpu.memory_space<vmem>>, vector<1x8xf32>
      %124 = vector.broadcast %119 : f32 to vector<1x8xf32>
      %125 = arith.mulf %124, %123 : vector<1x8xf32>
      %126 = arith.addf %121, %125 : vector<1x8xf32>
      %127 = arith.index_cast %117 : i32 to index
      %c0_113 = arith.constant 0 : index
      %128 = vector.load %arg36[%127, %c0_113] : memref<2x8xf32, #tpu.memory_space<vmem>>, vector<1x8xf32>
      tpu.vector_store %arg36[%127, %c0_113], %126 {strides = array<i32>} : memref<2x8xf32, #tpu.memory_space<vmem>>, vector<1x8xf32>,
    }
    %c16_i32_101 = arith.constant 16 : i32
    %c0_102 = arith.constant 0 : index
    %c0_103 = arith.constant 0 : index
    %109 = vector.load %arg36[%c0_102, %c0_103] : memref<2x8xf32, #tpu.memory_space<vmem>>, vector<2x8xf32>
    %c0_104 = arith.constant 0 : index
    %c0_105 = arith.constant 0 : index
    %110 = vector.load %arg28[%c0_104, %c0_105] : memref<8x3xf32, #tpu.memory_space<vmem>>, vector<8x3xf32>
    %cst_106 = arith.constant dense<0.000000e+00> : vector<2x3xf32>
    %111 = tpu.matmul %109, %110, %cst_106 {dimension_numbers = #tpu.dot_dimension_numbers<[1], [0], [0], [1], [0, 0, 1, 1], [], []>} : vector<2x8xf32>, vector<8x3xf32>, vector<2x3xf32> -> vector<2x3xf32>
    %c0_107 = arith.constant 0 : index
    %c0_108 = arith.constant 0 : index
    %112 = vector.load %arg29[%c0_107, %c0_108] : memref<1x3xf32, #tpu.memory_space<vmem>>, vector<1x3xf32>
    %113 = vector.broadcast %112 : vector<1x3xf32> to vector<2x3xf32>
    %114 = arith.addf %111, %113 : vector<2x3xf32>
    %c0_109 = arith.constant 0 : index
    %c0_110 = arith.constant 0 : index
    %115 = vector.load %arg31[%c0_109, %c0_110] : memref<2x3xf32, #tpu.memory_space<vmem>>, vector<2x3xf32>
    tpu.vector_store %arg31[%c0_109, %c0_110], %114 {strides = array<i32>} : memref<2x3xf32, #tpu.memory_space<vmem>>, vector<2x3xf32>,
    return
  }
}

</mosaic_0001>

<llo_original>
// kernel: tpu_custom_call.1
$region0: #{tpu_custom_call.1}
  #allocation0 [shape = 'u32[]', space=smem, size = 0x4, offset = 0x4, fixed_abs, tag = 'smem constant byte address 0x4 - core index']
  #allocation1 [shape = 'u32[144,128]{1,0:T(1,128)}', space=vmem, size = 0x12000, scoped, tag = 'internal scratch']
  #allocation2 [shape = 'f32[16,32]{1,0:T(8,128)}', space=vmem, size = 0x2000, scoped, tag = 'scratch operand']
  #allocation3 [shape = 'f32[32,32]{1,0:T(8,128)}', space=vmem, size = 0x4000, scoped, tag = 'scratch operand']
  #allocation4 [shape = 'f32[16,32]{1,0:T(8,128)}', space=vmem, size = 0x2000, scoped, tag = 'scratch operand']
  #allocation5 [shape = 'f32[16,8]{1,0:T(8,128)}', space=vmem, size = 0x2000, scoped, tag = 'scratch operand']
  #allocation6 [shape = 'f32[2,8]{1,0:T(2,128)}', space=vmem, size = 0x400, scoped, tag = 'scratch operand']
  %s0 = inlined_call_operand.smem [shape: u32[32], index: -1, kind: input, shape index: {}]
  %s1 = sld [smem:[%s0]]
  %s2 = scalar_lea.smem %s0, 1
  %s3 = sld [smem:[%s2]]
  %s4 = scalar_lea.smem %s0, 2
  %s5 = sld [smem:[%s4]]
  %s6 = scalar_lea.smem %s0, 3
  %s7 = sld [smem:[%s6]]
  %s8 = scalar_lea.smem %s0, 4
  %s9 = sld [smem:[%s8]]
  %s10 = scalar_lea.smem %s0, 5
  %s11 = sld [smem:[%s10]]
  %s12 = scalar_lea.smem %s0, 6
  %s13 = sld [smem:[%s12]]
  %s14 = scalar_lea.smem %s0, 7
  %s15 = sld [smem:[%s14]]
  %s16 = scalar_lea.smem %s0, 8
  %s17 = sld [smem:[%s16]]
  %s18 = scalar_lea.smem %s0, 9
  %s19 = sld [smem:[%s18]]
  %s20 = scalar_lea.smem %s0, 10
  %s21 = sld [smem:[%s20]]
  %s22 = scalar_lea.smem %s0, 11
  %s23 = sld [smem:[%s22]]
  %s24 = scalar_lea.smem %s0, 12
  %s25 = sld [smem:[%s24]]
  %s26 = scalar_lea.smem %s0, 13
  %s27 = sld [smem:[%s26]]
  %s28 = scalar_lea.smem %s0, 14
  %s29 = sld [smem:[%s28]]
  %s30 = scalar_lea.smem %s0, 15
  %s31 = sld [smem:[%s30]]
  %s32 = scalar_lea.smem %s0, 16
  %s33 = sld [smem:[%s32]]
  %s34 = scalar_lea.smem %s0, 17
  %s35 = sld [smem:[%s34]]
  %s36 = scalar_lea.smem %s0, 18
  %s37 = sld [smem:[%s36]]
  %s38 = scalar_lea.smem %s0, 19
  %s39 = sld [smem:[%s38]]
  %s40 = scalar_lea.smem %s0, 20
  %s41 = sld [smem:[%s40]]
  %s42 = scalar_lea.smem %s0, 21
  %s43 = sld [smem:[%s42]]
  %s44 = scalar_lea.smem %s0, 22
  %s45 = sld [smem:[%s44]]
  %s46 = scalar_lea.smem %s0, 23
  %s47 = sld [smem:[%s46]]
  %s48 = scalar_lea.smem %s0, 24
  %s49 = sld [smem:[%s48]]
  %s50 = scalar_lea.smem %s0, 25
  %s51 = sld [smem:[%s50]]
  %s52 = scalar_lea.smem %s0, 26
  %s53 = sld [smem:[%s52]]
  %s54 = scalar_lea.smem %s0, 27
  %s55 = sld [smem:[%s54]]
  %s56 = scalar_lea.smem %s0, 28
  %s57 = sld [smem:[%s56]]
  %s58 = scalar_lea.smem %s0, 29
  %s59 = sld [smem:[%s58]]
  %s60 = scalar_lea.smem %s0, 30
  %s61 = sld [smem:[%s60]]
  %s62 = scalar_lea.smem %s0, 31
  %s63 = sld [smem:[%s62]]
  %64 = xla_tuple %s61, %s63
  %s65 = sld [smem:[#allocation0]]
  $region179: #{tpu_custom_call.1} parent=0
    _
  %s67 = ssub.s32 1, %s65
  %s68 = scalar_select 0, %s67, %s65
  $region1: #{tpu_custom_call.1} parent=0
    #allocation7 [shape = 'u8[512]{0}', space=smem, size = 0x200, scoped, tag = 'input window, operand 0, single buffered']
    #allocation8 [shape = 's32[1]{0}', space=sflag, size = 0x4, scoped, tag = 'scoped memory for tpu_custom_call.1']
    #allocation9 [shape = 's32[1]{0}', space=sflag, size = 0x4, scoped, tag = 'scoped memory for tpu_custom_call.1']
    #allocation10 [shape = 'u8[512]{0}', space=smem, size = 0x200, scoped, tag = 'input window, operand 1, single buffered']
    #allocation11 [shape = 's32[1]{0}', space=sflag, size = 0x4, scoped, tag = 'scoped memory for tpu_custom_call.1']
    #allocation12 [shape = 'u8[512]{0}', space=smem, size = 0x200, scoped, tag = 'input window, operand 2, single buffered']
    #allocation13 [shape = 'u8[512]{0}', space=smem, size = 0x200, scoped, tag = 'input window, operand 3, single buffered']
    #allocation14 [shape = 's32[1]{0}', space=sflag, size = 0x4, scoped, tag = 'scoped memory for tpu_custom_call.1']
    #allocation15 [shape = 'u8[512]{0}', space=smem, size = 0x200, scoped, tag = 'input window, operand 4, single buffered']
    #allocation16 [shape = 'u8[1024]{0}', space=vmem, size = 0x400, scoped, tag = 'output window, operand 1, single buffered']
    %69 = vsyncpa [#allocation9], 0
    %70 = vsyncpa [#allocation11], 0
    %71 = vsyncpa [#allocation14], 0
    %72 = vsyncpa [#allocation8], 0
    // Predicated region
    $region2: #{tpu_custom_call.1} parent=1 // pred_check
      _
    $region3: #{tpu_custom_call.1} parent=1 // pred_check_branch
      %74 = sbr.rel (0) target = $region5
    $region4: #{tpu_custom_call.1} parent=1 // pred_region
      %s76 = ssub.s32 16, 16
      %77 = vsyncadd [#allocation9], %s76
      %s79 = sshll.u32 %s1, 4
      %s80 = int_to_ptr.vmem [resolvable:$true] %s79
      %82 = dma.vmem_to_smem %s80, 16, [#allocation7], [#allocation9]
    $region5: #{tpu_custom_call.1} parent=1 // pred_fallthru
      _
    // Predicated region
    $region6: #{tpu_custom_call.1} parent=1 // pred_check
      _
    $region7: #{tpu_custom_call.1} parent=1 // pred_check_branch
      %84 = sbr.rel (0) target = $region9
    $region8: #{tpu_custom_call.1} parent=1 // pred_region
      %s86 = ssub.s32 16, 16
      %87 = vsyncadd [#allocation11], %s86
      %s89 = sshll.u32 %s3, 4
      %s90 = int_to_ptr.vmem [resolvable:$true] %s89
      %92 = dma.vmem_to_smem %s90, 16, [#allocation10], [#allocation11]
    $region9: #{tpu_custom_call.1} parent=1 // pred_fallthru
      _
    // Predicated region
    $region10: #{tpu_custom_call.1} parent=1 // pred_check
      _
    $region11: #{tpu_custom_call.1} parent=1 // pred_check_branch
      %94 = sbr.rel (0) target = $region13
    $region12: #{tpu_custom_call.1} parent=1 // pred_region
      %s96 = ssub.s32 16, 16
      %97 = vsyncadd [#allocation11], %s96
      %s99 = sshll.u32 %s5, 4
      %s100 = int_to_ptr.vmem [resolvable:$true] %s99
      %102 = dma.vmem_to_smem %s100, 16, [#allocation12], [#allocation11]
    $region13: #{tpu_custom_call.1} parent=1 // pred_fallthru
      _
    // Predicated region
    $region14: #{tpu_custom_call.1} parent=1 // pred_check
      _
    $region15: #{tpu_custom_call.1} parent=1 // pred_check_branch
      %104 = sbr.rel (0) target = $region17
    $region16: #{tpu_custom_call.1} parent=1 // pred_region
      %s106 = ssub.s32 16, 16
      %107 = vsyncadd [#allocation14], %s106
      %s109 = sshll.u32 %s7, 4
      %s110 = int_to_ptr.vmem [resolvable:$true] %s109
      %112 = dma.vmem_to_smem %s110, 16, [#allocation13], [#allocation14]
    $region17: #{tpu_custom_call.1} parent=1 // pred_fallthru
      _
    // Predicated region
    $region18: #{tpu_custom_call.1} parent=1 // pred_check
      _
    $region19: #{tpu_custom_call.1} parent=1 // pred_check_branch
      %114 = sbr.rel (0) target = $region21
    $region20: #{tpu_custom_call.1} parent=1 // pred_region
      %s116 = ssub.s32 16, 16
      %117 = vsyncadd [#allocation14], %s116
      %s119 = sshll.u32 %s9, 4
      %s120 = int_to_ptr.vmem [resolvable:$true] %s119
      %122 = dma.vmem_to_smem %s120, 16, [#allocation15], [#allocation14]
    $region21: #{tpu_custom_call.1} parent=1 // pred_fallthru
      _
    // Predicated region
    $region22: #{tpu_custom_call.1} parent=1 // pred_check
      _
    $region23: #{tpu_custom_call.1} parent=1 // pred_check_branch
      %124 = sbr.rel (0) target = $region25
    $region24: #{tpu_custom_call.1} parent=1 // pred_region
      _
    $region25: #{tpu_custom_call.1} parent=1 // pred_fallthru
      _
    // Predicated region
    $region26: #{tpu_custom_call.1} parent=1 // pred_check
      _
    $region27: #{tpu_custom_call.1} parent=1 // pred_check_branch
      %126 = sbr.rel (0) target = $region29
    $region28: #{tpu_custom_call.1} parent=1 // pred_region
      _
    $region29: #{tpu_custom_call.1} parent=1 // pred_fallthru
      _
    // Predicated region
    $region30: #{tpu_custom_call.1} parent=1 // pred_check
      _
    $region31: #{tpu_custom_call.1} parent=1 // pred_check_branch
      %128 = sbr.rel (0) target = $region33
    $region32: #{tpu_custom_call.1} parent=1 // pred_region
      _
    $region33: #{tpu_custom_call.1} parent=1 // pred_fallthru
      _
    // Predicated region
    $region34: #{tpu_custom_call.1} parent=1 // pred_check
      _
    $region35: #{tpu_custom_call.1} parent=1 // pred_check_branch
      %130 = sbr.rel (0) target = $region37
    $region36: #{tpu_custom_call.1} parent=1 // pred_region
      _
    $region37: #{tpu_custom_call.1} parent=1 // pred_fallthru
      _
    // Predicated region
    $region38: #{tpu_custom_call.1} parent=1 // pred_check
      _
    $region39: #{tpu_custom_call.1} parent=1 // pred_check_branch
      %132 = sbr.rel (0) target = $region41
    $region40: #{tpu_custom_call.1} parent=1 // pred_region
      _
    $region41: #{tpu_custom_call.1} parent=1 // pred_fallthru
      _
    // Predicated region
    $region42: #{tpu_custom_call.1} parent=1 // pred_check
      _
    $region43: #{tpu_custom_call.1} parent=1 // pred_check_branch
      %134 = sbr.rel (0) target = $region45
    $region44: #{tpu_custom_call.1} parent=1 // pred_region
      _
    $region45: #{tpu_custom_call.1} parent=1 // pred_fallthru
      _
    // Predicated region
    $region46: #{tpu_custom_call.1} parent=1 // pred_check
      _
    $region47: #{tpu_custom_call.1} parent=1 // pred_check_branch
      %136 = sbr.rel (0) target = $region49
    $region48: #{tpu_custom_call.1} parent=1 // pred_region
      _
    $region49: #{tpu_custom_call.1} parent=1 // pred_fallthru
      _
    // Predicated region
    $region50: #{tpu_custom_call.1} parent=1 // pred_check
      _
    $region51: #{tpu_custom_call.1} parent=1 // pred_check_branch
      %138 = sbr.rel (0) target = $region53
    $region52: #{tpu_custom_call.1} parent=1 // pred_region
      _
    $region53: #{tpu_custom_call.1} parent=1 // pred_fallthru
      _
    // Predicated region
    $region54: #{tpu_custom_call.1} parent=1 // pred_check
      _
    $region55: #{tpu_custom_call.1} parent=1 // pred_check_branch
      %140 = sbr.rel (0) target = $region57
    $region56: #{tpu_custom_call.1} parent=1 // pred_region
      _
    $region57: #{tpu_custom_call.1} parent=1 // pred_fallthru
      _
    // Predicated region
    $region58: #{tpu_custom_call.1} parent=1 // pred_check
      _
    $region59: #{tpu_custom_call.1} parent=1 // pred_check_branch
      %142 = sbr.rel (0) target = $region61
    $region60: #{tpu_custom_call.1} parent=1 // pred_region
      _
    $region61: #{tpu_custom_call.1} parent=1 // pred_fallthru
      _
    // Predicated region
    $region62: #{tpu_custom_call.1} parent=1 // pred_check
      _
    $region63: #{tpu_custom_call.1} parent=1 // pred_check_branch
      %144 = sbr.rel (0) target = $region65
    $region64: #{tpu_custom_call.1} parent=1 // pred_region
      _
    $region65: #{tpu_custom_call.1} parent=1 // pred_fallthru
      _
    // Predicated region
    $region66: #{tpu_custom_call.1} parent=1 // pred_check
      _
    $region67: #{tpu_custom_call.1} parent=1 // pred_check_branch
      %146 = sbr.rel (0) target = $region69
    $region68: #{tpu_custom_call.1} parent=1 // pred_region
      _
    $region69: #{tpu_custom_call.1} parent=1 // pred_fallthru
      _
    // Predicated region
    $region70: #{tpu_custom_call.1} parent=1 // pred_check
      _
    $region71: #{tpu_custom_call.1} parent=1 // pred_check_branch
      %148 = sbr.rel (0) target = $region73
    $region72: #{tpu_custom_call.1} parent=1 // pred_region
      _
    $region73: #{tpu_custom_call.1} parent=1 // pred_fallthru
      _
    // Predicated region
    $region74: #{tpu_custom_call.1} parent=1 // pred_check
      _
    $region75: #{tpu_custom_call.1} parent=1 // pred_check_branch
      %150 = sbr.rel (0) target = $region77
    $region76: #{tpu_custom_call.1} parent=1 // pred_region
      _
    $region77: #{tpu_custom_call.1} parent=1 // pred_fallthru
      _
    // Predicated region
    $region78: #{tpu_custom_call.1} parent=1 // pred_check
      _
    $region79: #{tpu_custom_call.1} parent=1 // pred_check_branch
      %152 = sbr.rel (0) target = $region81
    $region80: #{tpu_custom_call.1} parent=1 // pred_region
      _
    $region81: #{tpu_custom_call.1} parent=1 // pred_fallthru
      _
    // Predicated region
    $region82: #{tpu_custom_call.1} parent=1 // pred_check
      _
    $region83: #{tpu_custom_call.1} parent=1 // pred_check_branch
      %154 = sbr.rel (0) target = $region85
    $region84: #{tpu_custom_call.1} parent=1 // pred_region
      _
    $region85: #{tpu_custom_call.1} parent=1 // pred_fallthru
      _
    // Predicated region
    $region86: #{tpu_custom_call.1} parent=1 // pred_check
      _
    $region87: #{tpu_custom_call.1} parent=1 // pred_check_branch
      %156 = sbr.rel (0) target = $region89
    $region88: #{tpu_custom_call.1} parent=1 // pred_region
      _
    $region89: #{tpu_custom_call.1} parent=1 // pred_fallthru
      _
    // Predicated region
    $region90: #{tpu_custom_call.1} parent=1 // pred_check
      _
    $region91: #{tpu_custom_call.1} parent=1 // pred_check_branch
      %158 = sbr.rel (0) target = $region93
    $region92: #{tpu_custom_call.1} parent=1 // pred_region
      _
    $region93: #{tpu_custom_call.1} parent=1 // pred_fallthru
      _
    // Predicated region
    $region94: #{tpu_custom_call.1} parent=1 // pred_check
      _
    $region95: #{tpu_custom_call.1} parent=1 // pred_check_branch
      %160 = sbr.rel (0) target = $region97
    $region96: #{tpu_custom_call.1} parent=1 // pred_region
      _
    $region97: #{tpu_custom_call.1} parent=1 // pred_fallthru
      _
    // Predicated region
    $region98: #{tpu_custom_call.1} parent=1 // pred_check
      _
    $region99: #{tpu_custom_call.1} parent=1 // pred_check_branch
      %162 = sbr.rel (0) target = $region101
    $region100: #{tpu_custom_call.1} parent=1 // pred_region
      _
    $region101: #{tpu_custom_call.1} parent=1 // pred_fallthru
      _
    // Predicated region
    $region102: #{tpu_custom_call.1} parent=1 // pred_check
      _
    $region103: #{tpu_custom_call.1} parent=1 // pred_check_branch
      %164 = sbr.rel (0) target = $region105
    $region104: #{tpu_custom_call.1} parent=1 // pred_region
      _
    $region105: #{tpu_custom_call.1} parent=1 // pred_fallthru
      _
    // Predicated region
    $region106: #{tpu_custom_call.1} parent=1 // pred_check
      _
    $region107: #{tpu_custom_call.1} parent=1 // pred_check_branch
      %166 = sbr.rel (0) target = $region109
    $region108: #{tpu_custom_call.1} parent=1 // pred_region
      _
    $region109: #{tpu_custom_call.1} parent=1 // pred_fallthru
      _
    // Predicated region
    $region110: #{tpu_custom_call.1} parent=1 // pred_check
      _
    $region111: #{tpu_custom_call.1} parent=1 // pred_check_branch
      %168 = sbr.rel (0) target = $region113
    $region112: #{tpu_custom_call.1} parent=1 // pred_region
      _
    $region113: #{tpu_custom_call.1} parent=1 // pred_fallthru
      _
    // Predicated region
    $region114: #{tpu_custom_call.1} parent=1 // pred_check
      _
    $region115: #{tpu_custom_call.1} parent=1 // pred_check_branch
      %170 = sbr.rel (0) target = $region117
    $region116: #{tpu_custom_call.1} parent=1 // pred_region
      _
    $region117: #{tpu_custom_call.1} parent=1 // pred_fallthru
      _
    // Predicated region
    $region118: #{tpu_custom_call.1} parent=1 // pred_check
      _
    $region119: #{tpu_custom_call.1} parent=1 // pred_check_branch
      %172 = sbr.rel (0) target = $region121
    $region120: #{tpu_custom_call.1} parent=1 // pred_region
      _
    $region121: #{tpu_custom_call.1} parent=1 // pred_fallthru
      _
    // Predicated region
    $region122: #{tpu_custom_call.1} parent=1 // pred_check
      _
    $region123: #{tpu_custom_call.1} parent=1 // pred_check_branch
      %174 = sbr.rel (0) target = $region125
    $region124: #{tpu_custom_call.1} parent=1 // pred_region
      %175 = dma.done [#allocation9], 16
    $region125: #{tpu_custom_call.1} parent=1 // pred_fallthru
      _
    // Predicated region
    $region126: #{tpu_custom_call.1} parent=1 // pred_check
      _
    $region127: #{tpu_custom_call.1} parent=1 // pred_check_branch
      %177 = sbr.rel (0) target = $region129
    $region128: #{tpu_custom_call.1} parent=1 // pred_region
      %178 = dma.done [#allocation11], 16
    $region129: #{tpu_custom_call.1} parent=1 // pred_fallthru
      _
    // Predicated region
    $region130: #{tpu_custom_call.1} parent=1 // pred_check
      _
    $region131: #{tpu_custom_call.1} parent=1 // pred_check_branch
      %180 = sbr.rel (0) target = $region133
    $region132: #{tpu_custom_call.1} parent=1 // pred_region
      %181 = dma.done [#allocation11], 16
    $region133: #{tpu_custom_call.1} parent=1 // pred_fallthru
      _
    // Predicated region
    $region134: #{tpu_custom_call.1} parent=1 // pred_check
      _
    $region135: #{tpu_custom_call.1} parent=1 // pred_check_branch
      %183 = sbr.rel (0) target = $region137
    $region136: #{tpu_custom_call.1} parent=1 // pred_region
      %184 = dma.done [#allocation14], 16
    $region137: #{tpu_custom_call.1} parent=1 // pred_fallthru
      _
    // Predicated region
    $region138: #{tpu_custom_call.1} parent=1 // pred_check
      _
    $region139: #{tpu_custom_call.1} parent=1 // pred_check_branch
      %186 = sbr.rel (0) target = $region141
    $region140: #{tpu_custom_call.1} parent=1 // pred_region
      %187 = dma.done [#allocation14], 16
    $region141: #{tpu_custom_call.1} parent=1 // pred_fallthru
      _
    %188 = sfence
    %v189 = vld [vmem:[%s13] sm:$0xff]
    %v190 = vld [vmem:[%s13 + $0x8] sm:$0xff]
    %v191 = vld [vmem:[%s13 + $0x10] sm:$0xff]
    %v192 = vld [vmem:[%s13 + $0x18] sm:$0xff]
    %v193 = vld [vmem:[%s11] sm:$0xff]
    %v194 = vld [vmem:[%s11 + $0x8] sm:$0xff]
    %v195 = vld [vmem:[%s17] sm:$0x1]
    %197 = vset.pattern.permute.xlu0 0
    %198 = vperm.xlu0 %197, %v193
    %v199 = vpop.permute.xlu0 %198
    %202 = vset.pattern.permute.xlu0 0
    %203 = vperm.xlu0 %202, %v194
    %v204 = vpop.permute.xlu0 %203
    %v207 = vlaneseq
    %v208 = vshrl.u32 %v207, 7
    %v209 = vsub.s32 0, %v208
    %v210 = vrot.slane %v195, %v209
    %v212 = vmul.f32 %v199, %v210
    %v213 = vmul.f32 %v204, %v210
    %v214 = vld [vmem:[%s19] sm:$0x1]
    %v216 = vlaneseq
    %v217 = vshrl.u32 %v216, 7
    %v218 = vsub.s32 0, %v217
    %v219 = vrot.slane %v214, %v218
    %v221 = vadd.f32 %v212, %v219
    %v222 = vadd.f32 %v213, %v219
    %v223 = vld [vmem:[%s21] sm:$0xf]
    %v224 = vld [vmem:[%s23] sm:$0x1]
    %v226 = vlaneseq
    %v227 = vshrl.u32 %v226, 7
    %v228 = vsub.s32 0, %v227
    %v229 = vrot.slane %v224, %v228
    %vm231 = vcmask 31744
    %v233 = vsel %vm231, %v189, 0
    %v236 = vsel %vm231, %v190, 0
    %v239 = vsel %vm231, %v191, 0
    %v242 = vsel %vm231, %v192, 0
    %vm244 = vcmask 1043456
    %v246 = vsel %vm244, %v223, 0
    %248 = vmatprep.subr.mxu0 0.0
    %249 = vmatpush1.msra.mxu0 0.0
    %250 = vmatprep.subr.mxu0 0.0
    %251 = vmatpush1.msra.mxu0 0.0
    %252 = vmatprep.subr.mxu0 0.0
    %253 = vmatpush1.msra.mxu0 0.0
    %254 = vmatprep.subr.mxu0 0.0
    %255 = vmatpush1.msra.mxu0 0.0
    %256 = vmatprep.subr.mxu0 0.0
    %257 = vmatpush1.msra.mxu0 0.0
    %258 = vmatprep.subr.mxu0 0.0
    %259 = vmatpush1.msra.mxu0 0.0
    %260 = vmatprep.subr.mxu0 0.0
    %261 = vmatpush1.msra.mxu0 0.0
    %262 = vmatprep.subr.mxu0 0.0
    %263 = vmatpush1.msra.mxu0 0.0
    %264 = vmatprep.subr.mxu0 0.0
    %265 = vmatpush1.msra.mxu0 0.0
    %266 = vmatprep.subr.mxu0 0.0
    %267 = vmatpush1.msra.mxu0 0.0
    %268 = vmatprep.subr.mxu0 0.0
    %269 = vmatpush1.msra.mxu0 0.0
    %270 = vmatprep.subr.mxu0 0.0
    %271 = vmatpush1.msra.mxu0 0.0
    %272 = vmatprep.subr.mxu0 0.0
    %273 = vmatpush1.msra.mxu0 0.0
    %274 = vmatprep.subr.mxu0 0.0
    %275 = vmatpush1.msra.mxu0 0.0
    %276 = vmatprep.subr.mxu0 0.0
    %277 = vmatpush1.msra.mxu0 0.0
    %278 = vmatprep.subr.mxu0 0.0
    %279 = vmatpush1.msra.mxu0 %v246
    %280 = vmatprep.subr.mxu0 0.0
    %281 = vmatpush2.msra.mxu0 0.0
    %282 = vmatprep.subr.mxu0 0.0
    %283 = vmatpush2.msra.mxu0 0.0
    %284 = vmatprep.subr.mxu0 0.0
    %285 = vmatpush2.msra.mxu0 0.0
    %286 = vmatprep.subr.mxu0 0.0
    %287 = vmatpush2.msra.mxu0 0.0
    %288 = vmatprep.subr.mxu0 0.0
    %289 = vmatpush2.msra.mxu0 0.0
    %290 = vmatprep.subr.mxu0 0.0
    %291 = vmatpush2.msra.mxu0 0.0
    %292 = vmatprep.subr.mxu0 0.0
    %293 = vmatpush2.msra.mxu0 0.0
    %294 = vmatprep.subr.mxu0 0.0
    %295 = vmatpush2.msra.mxu0 0.0
    %296 = vmatprep.subr.mxu0 0.0
    %297 = vmatpush2.msra.mxu0 0.0
    %298 = vmatprep.subr.mxu0 0.0
    %299 = vmatpush2.msra.mxu0 0.0
    %300 = vmatprep.subr.mxu0 0.0
    %301 = vmatpush2.msra.mxu0 0.0
    %302 = vmatprep.subr.mxu0 0.0
    %303 = vmatpush2.msra.mxu0 0.0
    %304 = vmatprep.subr.mxu0 0.0
    %305 = vmatpush2.msra.mxu0 0.0
    %306 = vmatprep.subr.mxu0 0.0
    %307 = vmatpush2.msra.mxu0 0.0
    %308 = vmatprep.subr.mxu0 0.0
    %309 = vmatpush2.msra.mxu0 0.0
    %310 = vmatprep.subr.mxu0 0.0
    %311 = vmatpush2.msra.mxu0 0.0
    %312 = vmatprep.mubr.f32.mxu0 0.0
    %313 = vmatmul.mubr.f32.gmra.mxu0 %v233
    %v314 = vpop.f32.mrf.mxu0
    %v315 = vadd.f32 %v229, %v314
    %v316 = vpop.f32.mrf.mxu0
    %317 = vmatprep.mubr.f32.mxu0 0.0
    %318 = vmatmul.mubr.f32.gmra.mxu0 %v236
    %v319 = vpop.f32.mrf.mxu0
    %v320 = vadd.f32 %v229, %v319
    %v321 = vpop.f32.mrf.mxu0
    %322 = vmatprep.mubr.f32.mxu0 0.0
    %323 = vmatmul.mubr.f32.gmra.mxu0 %v239
    %v324 = vpop.f32.mrf.mxu0
    %v325 = vadd.f32 %v229, %v324
    %v326 = vpop.f32.mrf.mxu0
    %327 = vmatprep.mubr.f32.mxu0 0.0
    %328 = vmatmul.mubr.f32.gmra.mxu0 %v242
    %v329 = vpop.f32.mrf.mxu0
    %v330 = vadd.f32 %v229, %v329
    %v331 = vpop.f32.mrf.mxu0
    %332 = vdwg.mxu0
    %vm333 = vcmask 261120
    %334 = vst.msk [vmem:[#allocation3] sm:$0xff] %vm333, %v315
    %335 = vst.msk [vmem:[#allocation3 + $0x8] sm:$0xff] %vm333, %v320
    %336 = vst.msk [vmem:[#allocation3 + $0x10] sm:$0xff] %vm333, %v325
    %337 = vst.msk [vmem:[#allocation3 + $0x18] sm:$0xff] %vm333, %v330
    %338 = vst.msk [vmem:[#allocation2] sm:$0xff] %vm333, %v221
    %339 = vst.msk [vmem:[#allocation2 + $0x8] sm:$0xff] %vm333, %v222
    %340 = vst.msk [vmem:[#allocation4] sm:$0xff] %vm333, 0.0
    %341 = vst.msk [vmem:[#allocation4 + $0x8] sm:$0xff] %vm333, 0.0
    loop: start=0, step=1, limit=32
    $region142: #{tpu_custom_call.1} parent=1 // loop_pre_header
      _
    $region143: #{tpu_custom_call.1} parent=1 // loop_header
      %s343 = sphi 0, %s347
      %p344 = scmp.ge.s32.totalorder %s343, 32
    $region144: #{tpu_custom_call.1} parent=1 // loop_header_branch
      %346 = sbr.rel (%p344) target = $region148
    $region145: #{tpu_custom_call.1} parent=1 // loop_body
      %s348 = sld [smem:[#allocation7 + %s343]]
      %s349 = sld [smem:[#allocation10 + %s343]]
      %s350 = scalar_lea.vmem [#allocation2], %s348
      %v351 = vld [vmem:[%s350] sm:$0x1]
      %s352 = scalar_lea.vmem [#allocation3], %s343
      %v353 = vld [vmem:[%s352] sm:$0x1]
      %v354 = vadd.f32 %v351, %v353
      %v355 = vmax.f32 %v354, 0.0
      %s356 = scalar_lea.vmem [#allocation4], %s349
      %v357 = vld [vmem:[%s356] sm:$0x1]
      %v358 = vadd.f32 %v357, %v355
      %vm359 = vcmask 253952
      %360 = vst.msk [vmem:[%s356] sm:$0x1] %vm359, %v358
    $region146: #{tpu_custom_call.1} parent=1 // loop_footer
      %s347 = sadd.s32 1, %s343
    $region147: #{tpu_custom_call.1} parent=1 // loop_footer_branch
      %342 = sbr.rel target = $region143
    $region148: #{tpu_custom_call.1} parent=1 // loop_exit
      _
    %s361 = sld [smem:[#allocation13]]
    %s362 = sadd.f32 %s361, 1.0
    %v363 = vstv %s362
    %v364 = vmul.f32 %v363, %v221
    %v365 = vmul.f32 %v363, %v222
    %v366 = vld [vmem:[#allocation4] sm:$0xff]
    %v367 = vld [vmem:[#allocation4 + $0x8] sm:$0xff]
    %v368 = vadd.f32 %v364, %v366
    %v369 = vadd.f32 %v365, %v367
    %v370 = vld [vmem:[%s25] sm:$0xff]
    %v371 = vld [vmem:[%s25 + $0x8] sm:$0xff]
    %v372 = vld [vmem:[%s25 + $0x10] sm:$0xff]
    %v373 = vld [vmem:[%s25 + $0x18] sm:$0xff]
    %v374 = vld [vmem:[%s27] sm:$0x1]
    %v376 = vlaneseq
    %v377 = vshrl.u32 %v376, 7
    %v378 = vsub.s32 0, %v377
    %v379 = vrot.slane %v374, %v378
    %v382 = vsel %vm333, %v368, 0
    %v385 = vsel %vm333, %v369, 0
    %387 = vmatprep.subr.mxu0 0.0
    %388 = vmatpush1.msra.mxu0 0.0
    %389 = vmatprep.subr.mxu0 0.0
    %390 = vmatpush1.msra.mxu0 0.0
    %391 = vmatprep.subr.mxu0 0.0
    %392 = vmatpush1.msra.mxu0 0.0
    %393 = vmatprep.subr.mxu0 0.0
    %394 = vmatpush1.msra.mxu0 0.0
    %395 = vmatprep.subr.mxu0 0.0
    %396 = vmatpush1.msra.mxu0 0.0
    %397 = vmatprep.subr.mxu0 0.0
    %398 = vmatpush1.msra.mxu0 0.0
    %399 = vmatprep.subr.mxu0 0.0
    %400 = vmatpush1.msra.mxu0 0.0
    %401 = vmatprep.subr.mxu0 0.0
    %402 = vmatpush1.msra.mxu0 0.0
    %403 = vmatprep.subr.mxu0 0.0
    %404 = vmatpush1.msra.mxu0 0.0
    %405 = vmatprep.subr.mxu0 0.0
    %406 = vmatpush1.msra.mxu0 0.0
    %407 = vmatprep.subr.mxu0 0.0
    %408 = vmatpush1.msra.mxu0 0.0
    %409 = vmatprep.subr.mxu0 0.0
    %410 = vmatpush1.msra.mxu0 0.0
    %411 = vmatprep.subr.mxu0 0.0
    %412 = vmatpush1.msra.mxu0 %v373
    %413 = vmatprep.subr.mxu0 0.0
    %414 = vmatpush1.msra.mxu0 %v372
    %415 = vmatprep.subr.mxu0 0.0
    %416 = vmatpush1.msra.mxu0 %v371
    %417 = vmatprep.subr.mxu0 0.0
    %418 = vmatpush1.msra.mxu0 %v370
    %419 = vmatprep.subr.mxu0 0.0
    %420 = vmatpush2.msra.mxu0 0.0
    %421 = vmatprep.subr.mxu0 0.0
    %422 = vmatpush2.msra.mxu0 0.0
    %423 = vmatprep.subr.mxu0 0.0
    %424 = vmatpush2.msra.mxu0 0.0
    %425 = vmatprep.subr.mxu0 0.0
    %426 = vmatpush2.msra.mxu0 0.0
    %427 = vmatprep.subr.mxu0 0.0
    %428 = vmatpush2.msra.mxu0 0.0
    %429 = vmatprep.subr.mxu0 0.0
    %430 = vmatpush2.msra.mxu0 0.0
    %431 = vmatprep.subr.mxu0 0.0
    %432 = vmatpush2.msra.mxu0 0.0
    %433 = vmatprep.subr.mxu0 0.0
    %434 = vmatpush2.msra.mxu0 0.0
    %435 = vmatprep.subr.mxu0 0.0
    %436 = vmatpush2.msra.mxu0 0.0
    %437 = vmatprep.subr.mxu0 0.0
    %438 = vmatpush2.msra.mxu0 0.0
    %439 = vmatprep.subr.mxu0 0.0
    %440 = vmatpush2.msra.mxu0 0.0
    %441 = vmatprep.subr.mxu0 0.0
    %442 = vmatpush2.msra.mxu0 0.0
    %443 = vmatprep.subr.mxu0 0.0
    %444 = vmatpush2.msra.mxu0 0.0
    %445 = vmatprep.subr.mxu0 0.0
    %446 = vmatpush2.msra.mxu0 0.0
    %447 = vmatprep.subr.mxu0 0.0
    %448 = vmatpush2.msra.mxu0 0.0
    %449 = vmatprep.subr.mxu0 0.0
    %450 = vmatpush2.msra.mxu0 0.0
    %451 = vmatprep.mubr.f32.mxu0 0.0
    %452 = vmatmul.mubr.f32.gmra.mxu0 %v382
    %v453 = vpop.f32.mrf.mxu0
    %v454 = vadd.f32 %v379, %v453
    %v455 = vpop.f32.mrf.mxu0
    %456 = vmatprep.mubr.f32.mxu0 0.0
    %457 = vmatmul.mubr.f32.gmra.mxu0 %v385
    %v458 = vpop.f32.mrf.mxu0
    %v459 = vadd.f32 %v379, %v458
    %v460 = vpop.f32.mrf.mxu0
    %461 = vdwg.mxu0
    %v462 = vmax.f32 %v454, 0.0
    %v463 = vmax.f32 %v459, 0.0
    %v464 = vld [vmem:[%s29] sm:$0xff]
    %v465 = vld [vmem:[%s29 + $0x8] sm:$0xff]
    %v466 = vld [vmem:[%s29 + $0x10] sm:$0xff]
    %v467 = vld [vmem:[%s29 + $0x18] sm:$0xff]
    %v468 = vld [vmem:[%s29 + $0x20] sm:$0xff]
    %v469 = vld [vmem:[%s29 + $0x28] sm:$0xff]
    %v470 = vld [vmem:[%s29 + $0x30] sm:$0xff]
    %v471 = vld [vmem:[%s29 + $0x38] sm:$0xff]
    %v472 = vld [vmem:[%s31] sm:$0x1]
    %v474 = vlaneseq
    %v475 = vshrl.u32 %v474, 7
    %v476 = vsub.s32 0, %v475
    %v477 = vrot.slane %v472, %v476
    %vm479 = vcmask 523264
    %v481 = vsel %vm479, %v462, 0
    %v484 = vsel %vm479, %v463, 0
    %486 = vmatprep.subr.mxu0 0.0
    %487 = vmatpush1.msra.mxu0 0.0
    %488 = vmatprep.subr.mxu0 0.0
    %489 = vmatpush1.msra.mxu0 0.0
    %490 = vmatprep.subr.mxu0 0.0
    %491 = vmatpush1.msra.mxu0 0.0
    %492 = vmatprep.subr.mxu0 0.0
    %493 = vmatpush1.msra.mxu0 0.0
    %494 = vmatprep.subr.mxu0 0.0
    %495 = vmatpush1.msra.mxu0 0.0
    %496 = vmatprep.subr.mxu0 0.0
    %497 = vmatpush1.msra.mxu0 0.0
    %498 = vmatprep.subr.mxu0 0.0
    %499 = vmatpush1.msra.mxu0 0.0
    %500 = vmatprep.subr.mxu0 0.0
    %501 = vmatpush1.msra.mxu0 0.0
    %502 = vmatprep.subr.mxu0 0.0
    %503 = vmatpush1.msra.mxu0 %v471
    %504 = vmatprep.subr.mxu0 0.0
    %505 = vmatpush1.msra.mxu0 %v470
    %506 = vmatprep.subr.mxu0 0.0
    %507 = vmatpush1.msra.mxu0 %v469
    %508 = vmatprep.subr.mxu0 0.0
    %509 = vmatpush1.msra.mxu0 %v468
    %510 = vmatprep.subr.mxu0 0.0
    %511 = vmatpush1.msra.mxu0 %v467
    %512 = vmatprep.subr.mxu0 0.0
    %513 = vmatpush1.msra.mxu0 %v466
    %514 = vmatprep.subr.mxu0 0.0
    %515 = vmatpush1.msra.mxu0 %v465
    %516 = vmatprep.subr.mxu0 0.0
    %517 = vmatpush1.msra.mxu0 %v464
    %518 = vmatprep.subr.mxu0 0.0
    %519 = vmatpush2.msra.mxu0 0.0
    %520 = vmatprep.subr.mxu0 0.0
    %521 = vmatpush2.msra.mxu0 0.0
    %522 = vmatprep.subr.mxu0 0.0
    %523 = vmatpush2.msra.mxu0 0.0
    %524 = vmatprep.subr.mxu0 0.0
    %525 = vmatpush2.msra.mxu0 0.0
    %526 = vmatprep.subr.mxu0 0.0
    %527 = vmatpush2.msra.mxu0 0.0
    %528 = vmatprep.subr.mxu0 0.0
    %529 = vmatpush2.msra.mxu0 0.0
    %530 = vmatprep.subr.mxu0 0.0
    %531 = vmatpush2.msra.mxu0 0.0
    %532 = vmatprep.subr.mxu0 0.0
    %533 = vmatpush2.msra.mxu0 0.0
    %534 = vmatprep.subr.mxu0 0.0
    %535 = vmatpush2.msra.mxu0 0.0
    %536 = vmatprep.subr.mxu0 0.0
    %537 = vmatpush2.msra.mxu0 0.0
    %538 = vmatprep.subr.mxu0 0.0
    %539 = vmatpush2.msra.mxu0 0.0
    %540 = vmatprep.subr.mxu0 0.0
    %541 = vmatpush2.msra.mxu0 0.0
    %542 = vmatprep.subr.mxu0 0.0
    %543 = vmatpush2.msra.mxu0 0.0
    %544 = vmatprep.subr.mxu0 0.0
    %545 = vmatpush2.msra.mxu0 0.0
    %546 = vmatprep.subr.mxu0 0.0
    %547 = vmatpush2.msra.mxu0 0.0
    %548 = vmatprep.subr.mxu0 0.0
    %549 = vmatpush2.msra.mxu0 0.0
    %550 = vmatprep.mubr.f32.mxu0 0.0
    %551 = vmatmul.mubr.f32.gmra.mxu0 %v481
    %v552 = vpop.f32.mrf.mxu0
    %v553 = vadd.f32 %v477, %v552
    %v554 = vpop.f32.mrf.mxu0
    %555 = vmatprep.mubr.f32.mxu0 0.0
    %556 = vmatmul.mubr.f32.gmra.mxu0 %v484
    %v557 = vpop.f32.mrf.mxu0
    %v558 = vadd.f32 %v477, %v557
    %v559 = vpop.f32.mrf.mxu0
    %560 = vdwg.mxu0
    %vm561 = vcmp.gt.f32.partialorder %v553, 0.0
    %vm562 = vcmp.gt.f32.partialorder %v558, 0.0
    %v563 = vmul.f32 %v553, 0.1
    %v564 = vmul.f32 %v558, 0.1
    %v565 = vsel %vm561, %v553, %v563
    %v566 = vsel %vm562, %v558, %v564
    %v567 = vld [vmem:[%s33] sm:$0xff]
    %v568 = vld [vmem:[%s33 + $0x8] sm:$0xff]
    %v569 = vld [vmem:[%s33 + $0x10] sm:$0xff]
    %v570 = vld [vmem:[%s33 + $0x18] sm:$0xff]
    %v571 = vld [vmem:[%s35] sm:$0x1]
    %v573 = vlaneseq
    %v574 = vshrl.u32 %v573, 7
    %v575 = vsub.s32 0, %v574
    %v576 = vrot.slane %v571, %v575
    %v579 = vsel %vm333, %v565, 0
    %v582 = vsel %vm333, %v566, 0
    %584 = vmatprep.subr.mxu0 0.0
    %585 = vmatpush1.msra.mxu0 0.0
    %586 = vmatprep.subr.mxu0 0.0
    %587 = vmatpush1.msra.mxu0 0.0
    %588 = vmatprep.subr.mxu0 0.0
    %589 = vmatpush1.msra.mxu0 0.0
    %590 = vmatprep.subr.mxu0 0.0
    %591 = vmatpush1.msra.mxu0 0.0
    %592 = vmatprep.subr.mxu0 0.0
    %593 = vmatpush1.msra.mxu0 0.0
    %594 = vmatprep.subr.mxu0 0.0
    %595 = vmatpush1.msra.mxu0 0.0
    %596 = vmatprep.subr.mxu0 0.0
    %597 = vmatpush1.msra.mxu0 0.0
    %598 = vmatprep.subr.mxu0 0.0
    %599 = vmatpush1.msra.mxu0 0.0
    %600 = vmatprep.subr.mxu0 0.0
    %601 = vmatpush1.msra.mxu0 0.0
    %602 = vmatprep.subr.mxu0 0.0
    %603 = vmatpush1.msra.mxu0 0.0
    %604 = vmatprep.subr.mxu0 0.0
    %605 = vmatpush1.msra.mxu0 0.0
    %606 = vmatprep.subr.mxu0 0.0
    %607 = vmatpush1.msra.mxu0 0.0
    %608 = vmatprep.subr.mxu0 0.0
    %609 = vmatpush1.msra.mxu0 %v570
    %610 = vmatprep.subr.mxu0 0.0
    %611 = vmatpush1.msra.mxu0 %v569
    %612 = vmatprep.subr.mxu0 0.0
    %613 = vmatpush1.msra.mxu0 %v568
    %614 = vmatprep.subr.mxu0 0.0
    %615 = vmatpush1.msra.mxu0 %v567
    %616 = vmatprep.subr.mxu0 0.0
    %617 = vmatpush2.msra.mxu0 0.0
    %618 = vmatprep.subr.mxu0 0.0
    %619 = vmatpush2.msra.mxu0 0.0
    %620 = vmatprep.subr.mxu0 0.0
    %621 = vmatpush2.msra.mxu0 0.0
    %622 = vmatprep.subr.mxu0 0.0
    %623 = vmatpush2.msra.mxu0 0.0
    %624 = vmatprep.subr.mxu0 0.0
    %625 = vmatpush2.msra.mxu0 0.0
    %626 = vmatprep.subr.mxu0 0.0
    %627 = vmatpush2.msra.mxu0 0.0
    %628 = vmatprep.subr.mxu0 0.0
    %629 = vmatpush2.msra.mxu0 0.0
    %630 = vmatprep.subr.mxu0 0.0
    %631 = vmatpush2.msra.mxu0 0.0
    %632 = vmatprep.subr.mxu0 0.0
    %633 = vmatpush2.msra.mxu0 0.0
    %634 = vmatprep.subr.mxu0 0.0
    %635 = vmatpush2.msra.mxu0 0.0
    %636 = vmatprep.subr.mxu0 0.0
    %637 = vmatpush2.msra.mxu0 0.0
    %638 = vmatprep.subr.mxu0 0.0
    %639 = vmatpush2.msra.mxu0 0.0
    %640 = vmatprep.subr.mxu0 0.0
    %641 = vmatpush2.msra.mxu0 0.0
    %642 = vmatprep.subr.mxu0 0.0
    %643 = vmatpush2.msra.mxu0 0.0
    %644 = vmatprep.subr.mxu0 0.0
    %645 = vmatpush2.msra.mxu0 0.0
    %646 = vmatprep.subr.mxu0 0.0
    %647 = vmatpush2.msra.mxu0 0.0
    %648 = vmatprep.mubr.f32.mxu0 0.0
    %649 = vmatmul.mubr.f32.gmra.mxu0 %v579
    %v650 = vpop.f32.mrf.mxu0
    %v651 = vadd.f32 %v576, %v650
    %v652 = vpop.f32.mrf.mxu0
    %653 = vmatprep.mubr.f32.mxu0 0.0
    %654 = vmatmul.mubr.f32.gmra.mxu0 %v582
    %v655 = vpop.f32.mrf.mxu0
    %v656 = vadd.f32 %v576, %v655
    %v657 = vpop.f32.mrf.mxu0
    %658 = vdwg.mxu0
    %v659 = vld [vmem:[%s37] sm:$0xf]
    %v660 = vld [vmem:[%s39] sm:$0x1]
    %v662 = vlaneseq
    %v663 = vshrl.u32 %v662, 7
    %v664 = vsub.s32 0, %v663
    %v665 = vrot.slane %v660, %v664
    %v668 = vsel %vm244, %v659, 0
    %670 = vmatprep.subr.mxu0 0.0
    %671 = vmatpush1.msra.mxu0 0.0
    %672 = vmatprep.subr.mxu0 0.0
    %673 = vmatpush1.msra.mxu0 0.0
    %674 = vmatprep.subr.mxu0 0.0
    %675 = vmatpush1.msra.mxu0 0.0
    %676 = vmatprep.subr.mxu0 0.0
    %677 = vmatpush1.msra.mxu0 0.0
    %678 = vmatprep.subr.mxu0 0.0
    %679 = vmatpush1.msra.mxu0 0.0
    %680 = vmatprep.subr.mxu0 0.0
    %681 = vmatpush1.msra.mxu0 0.0
    %682 = vmatprep.subr.mxu0 0.0
    %683 = vmatpush1.msra.mxu0 0.0
    %684 = vmatprep.subr.mxu0 0.0
    %685 = vmatpush1.msra.mxu0 0.0
    %686 = vmatprep.subr.mxu0 0.0
    %687 = vmatpush1.msra.mxu0 0.0
    %688 = vmatprep.subr.mxu0 0.0
    %689 = vmatpush1.msra.mxu0 0.0
    %690 = vmatprep.subr.mxu0 0.0
    %691 = vmatpush1.msra.mxu0 0.0
    %692 = vmatprep.subr.mxu0 0.0
    %693 = vmatpush1.msra.mxu0 0.0
    %694 = vmatprep.subr.mxu0 0.0
    %695 = vmatpush1.msra.mxu0 0.0
    %696 = vmatprep.subr.mxu0 0.0
    %697 = vmatpush1.msra.mxu0 0.0
    %698 = vmatprep.subr.mxu0 0.0
    %699 = vmatpush1.msra.mxu0 0.0
    %700 = vmatprep.subr.mxu0 0.0
    %701 = vmatpush1.msra.mxu0 %v668
    %702 = vmatprep.subr.mxu0 0.0
    %703 = vmatpush2.msra.mxu0 0.0
    %704 = vmatprep.subr.mxu0 0.0
    %705 = vmatpush2.msra.mxu0 0.0
    %706 = vmatprep.subr.mxu0 0.0
    %707 = vmatpush2.msra.mxu0 0.0
    %708 = vmatprep.subr.mxu0 0.0
    %709 = vmatpush2.msra.mxu0 0.0
    %710 = vmatprep.subr.mxu0 0.0
    %711 = vmatpush2.msra.mxu0 0.0
    %712 = vmatprep.subr.mxu0 0.0
    %713 = vmatpush2.msra.mxu0 0.0
    %714 = vmatprep.subr.mxu0 0.0
    %715 = vmatpush2.msra.mxu0 0.0
    %716 = vmatprep.subr.mxu0 0.0
    %717 = vmatpush2.msra.mxu0 0.0
    %718 = vmatprep.subr.mxu0 0.0
    %719 = vmatpush2.msra.mxu0 0.0
    %720 = vmatprep.subr.mxu0 0.0
    %721 = vmatpush2.msra.mxu0 0.0
    %722 = vmatprep.subr.mxu0 0.0
    %723 = vmatpush2.msra.mxu0 0.0
    %724 = vmatprep.subr.mxu0 0.0
    %725 = vmatpush2.msra.mxu0 0.0
    %726 = vmatprep.subr.mxu0 0.0
    %727 = vmatpush2.msra.mxu0 0.0
    %728 = vmatprep.subr.mxu0 0.0
    %729 = vmatpush2.msra.mxu0 0.0
    %730 = vmatprep.subr.mxu0 0.0
    %731 = vmatpush2.msra.mxu0 0.0
    %732 = vmatprep.subr.mxu0 0.0
    %733 = vmatpush2.msra.mxu0 0.0
    %734 = vmatprep.mubr.f32.mxu0 0.0
    %735 = vmatmul.mubr.f32.gmra.mxu0 %v233
    %v736 = vpop.f32.mrf.mxu0
    %v737 = vadd.f32 %v665, %v736
    %v738 = vpop.f32.mrf.mxu0
    %739 = vmatprep.mubr.f32.mxu0 0.0
    %740 = vmatmul.mubr.f32.gmra.mxu0 %v236
    %v741 = vpop.f32.mrf.mxu0
    %v742 = vadd.f32 %v665, %v741
    %v743 = vpop.f32.mrf.mxu0
    %744 = vmatprep.mubr.f32.mxu0 0.0
    %745 = vmatmul.mubr.f32.gmra.mxu0 %v239
    %v746 = vpop.f32.mrf.mxu0
    %v747 = vadd.f32 %v665, %v746
    %v748 = vpop.f32.mrf.mxu0
    %749 = vmatprep.mubr.f32.mxu0 0.0
    %750 = vmatmul.mubr.f32.gmra.mxu0 %v242
    %v751 = vpop.f32.mrf.mxu0
    %v752 = vadd.f32 %v665, %v751
    %v753 = vpop.f32.mrf.mxu0
    %754 = vdwg.mxu0
    %755 = vst.msk [vmem:[#allocation3] sm:$0xff] %vm333, %v737
    %756 = vst.msk [vmem:[#allocation3 + $0x8] sm:$0xff] %vm333, %v742
    %757 = vst.msk [vmem:[#allocation3 + $0x10] sm:$0xff] %vm333, %v747
    %758 = vst.msk [vmem:[#allocation3 + $0x18] sm:$0xff] %vm333, %v752
    %759 = vst.msk [vmem:[#allocation2] sm:$0xff] %vm333, %v651
    %760 = vst.msk [vmem:[#allocation2 + $0x8] sm:$0xff] %vm333, %v656
    %761 = vst.msk [vmem:[#allocation4] sm:$0xff] %vm333, 0.0
    %762 = vst.msk [vmem:[#allocation4 + $0x8] sm:$0xff] %vm333, 0.0
    loop: start=0, step=1, limit=32
    $region149: #{tpu_custom_call.1} parent=1 // loop_pre_header
      _
    $region150: #{tpu_custom_call.1} parent=1 // loop_header
      %s764 = sphi 0, %s768
      %p765 = scmp.ge.s32.totalorder %s764, 32
    $region151: #{tpu_custom_call.1} parent=1 // loop_header_branch
      %767 = sbr.rel (%p765) target = $region155
    $region152: #{tpu_custom_call.1} parent=1 // loop_body
      %s769 = sld [smem:[#allocation7 + %s764]]
      %s770 = sld [smem:[#allocation10 + %s764]]
      %s771 = scalar_lea.vmem [#allocation2], %s769
      %v772 = vld [vmem:[%s771] sm:$0x1]
      %s773 = scalar_lea.vmem [#allocation3], %s764
      %v774 = vld [vmem:[%s773] sm:$0x1]
      %v775 = vadd.f32 %v772, %v774
      %v776 = vmax.f32 %v775, 0.0
      %s777 = scalar_lea.vmem [#allocation4], %s770
      %v778 = vld [vmem:[%s777] sm:$0x1]
      %v779 = vadd.f32 %v778, %v776
      %vm780 = vcmask 253952
      %781 = vst.msk [vmem:[%s777] sm:$0x1] %vm780, %v779
    $region153: #{tpu_custom_call.1} parent=1 // loop_footer
      %s768 = sadd.s32 1, %s764
    $region154: #{tpu_custom_call.1} parent=1 // loop_footer_branch
      %763 = sbr.rel target = $region150
    $region155: #{tpu_custom_call.1} parent=1 // loop_exit
      _
    %s782 = sld [smem:[#allocation13 + $0x1]]
    %s783 = sadd.f32 %s782, 1.0
    %v784 = vstv %s783
    %v785 = vmul.f32 %v784, %v651
    %v786 = vmul.f32 %v784, %v656
    %v787 = vld [vmem:[#allocation4] sm:$0xff]
    %v788 = vld [vmem:[#allocation4 + $0x8] sm:$0xff]
    %v789 = vadd.f32 %v785, %v787
    %v790 = vadd.f32 %v786, %v788
    %v791 = vld [vmem:[%s41] sm:$0xff]
    %v792 = vld [vmem:[%s41 + $0x8] sm:$0xff]
    %v793 = vld [vmem:[%s41 + $0x10] sm:$0xff]
    %v794 = vld [vmem:[%s41 + $0x18] sm:$0xff]
    %v795 = vld [vmem:[%s43] sm:$0x1]
    %v797 = vlaneseq
    %v798 = vshrl.u32 %v797, 7
    %v799 = vsub.s32 0, %v798
    %v800 = vrot.slane %v795, %v799
    %v803 = vsel %vm333, %v789, 0
    %v806 = vsel %vm333, %v790, 0
    %808 = vmatprep.subr.mxu0 0.0
    %809 = vmatpush1.msra.mxu0 0.0
    %810 = vmatprep.subr.mxu0 0.0
    %811 = vmatpush1.msra.mxu0 0.0
    %812 = vmatprep.subr.mxu0 0.0
    %813 = vmatpush1.msra.mxu0 0.0
    %814 = vmatprep.subr.mxu0 0.0
    %815 = vmatpush1.msra.mxu0 0.0
    %816 = vmatprep.subr.mxu0 0.0
    %817 = vmatpush1.msra.mxu0 0.0
    %818 = vmatprep.subr.mxu0 0.0
    %819 = vmatpush1.msra.mxu0 0.0
    %820 = vmatprep.subr.mxu0 0.0
    %821 = vmatpush1.msra.mxu0 0.0
    %822 = vmatprep.subr.mxu0 0.0
    %823 = vmatpush1.msra.mxu0 0.0
    %824 = vmatprep.subr.mxu0 0.0
    %825 = vmatpush1.msra.mxu0 0.0
    %826 = vmatprep.subr.mxu0 0.0
    %827 = vmatpush1.msra.mxu0 0.0
    %828 = vmatprep.subr.mxu0 0.0
    %829 = vmatpush1.msra.mxu0 0.0
    %830 = vmatprep.subr.mxu0 0.0
    %831 = vmatpush1.msra.mxu0 0.0
    %832 = vmatprep.subr.mxu0 0.0
    %833 = vmatpush1.msra.mxu0 %v794
    %834 = vmatprep.subr.mxu0 0.0
    %835 = vmatpush1.msra.mxu0 %v793
    %836 = vmatprep.subr.mxu0 0.0
    %837 = vmatpush1.msra.mxu0 %v792
    %838 = vmatprep.subr.mxu0 0.0
    %839 = vmatpush1.msra.mxu0 %v791
    %840 = vmatprep.subr.mxu0 0.0
    %841 = vmatpush2.msra.mxu0 0.0
    %842 = vmatprep.subr.mxu0 0.0
    %843 = vmatpush2.msra.mxu0 0.0
    %844 = vmatprep.subr.mxu0 0.0
    %845 = vmatpush2.msra.mxu0 0.0
    %846 = vmatprep.subr.mxu0 0.0
    %847 = vmatpush2.msra.mxu0 0.0
    %848 = vmatprep.subr.mxu0 0.0
    %849 = vmatpush2.msra.mxu0 0.0
    %850 = vmatprep.subr.mxu0 0.0
    %851 = vmatpush2.msra.mxu0 0.0
    %852 = vmatprep.subr.mxu0 0.0
    %853 = vmatpush2.msra.mxu0 0.0
    %854 = vmatprep.subr.mxu0 0.0
    %855 = vmatpush2.msra.mxu0 0.0
    %856 = vmatprep.subr.mxu0 0.0
    %857 = vmatpush2.msra.mxu0 0.0
    %858 = vmatprep.subr.mxu0 0.0
    %859 = vmatpush2.msra.mxu0 0.0
    %860 = vmatprep.subr.mxu0 0.0
    %861 = vmatpush2.msra.mxu0 0.0
    %862 = vmatprep.subr.mxu0 0.0
    %863 = vmatpush2.msra.mxu0 0.0
    %864 = vmatprep.subr.mxu0 0.0
    %865 = vmatpush2.msra.mxu0 0.0
    %866 = vmatprep.subr.mxu0 0.0
    %867 = vmatpush2.msra.mxu0 0.0
    %868 = vmatprep.subr.mxu0 0.0
    %869 = vmatpush2.msra.mxu0 0.0
    %870 = vmatprep.subr.mxu0 0.0
    %871 = vmatpush2.msra.mxu0 0.0
    %872 = vmatprep.mubr.f32.mxu0 0.0
    %873 = vmatmul.mubr.f32.gmra.mxu0 %v803
    %v874 = vpop.f32.mrf.mxu0
    %v875 = vadd.f32 %v800, %v874
    %v876 = vpop.f32.mrf.mxu0
    %877 = vmatprep.mubr.f32.mxu0 0.0
    %878 = vmatmul.mubr.f32.gmra.mxu0 %v806
    %v879 = vpop.f32.mrf.mxu0
    %v880 = vadd.f32 %v800, %v879
    %v881 = vpop.f32.mrf.mxu0
    %882 = vdwg.mxu0
    %v883 = vmax.f32 %v875, 0.0
    %v884 = vmax.f32 %v880, 0.0
    %v885 = vld [vmem:[%s45] sm:$0xff]
    %v886 = vld [vmem:[%s45 + $0x8] sm:$0xff]
    %v887 = vld [vmem:[%s45 + $0x10] sm:$0xff]
    %v888 = vld [vmem:[%s45 + $0x18] sm:$0xff]
    %v889 = vld [vmem:[%s45 + $0x20] sm:$0xff]
    %v890 = vld [vmem:[%s45 + $0x28] sm:$0xff]
    %v891 = vld [vmem:[%s45 + $0x30] sm:$0xff]
    %v892 = vld [vmem:[%s45 + $0x38] sm:$0xff]
    %v893 = vld [vmem:[%s47] sm:$0x1]
    %v895 = vlaneseq
    %v896 = vshrl.u32 %v895, 7
    %v897 = vsub.s32 0, %v896
    %v898 = vrot.slane %v893, %v897
    %v901 = vsel %vm479, %v883, 0
    %v904 = vsel %vm479, %v884, 0
    %906 = vmatprep.subr.mxu0 0.0
    %907 = vmatpush1.msra.mxu0 0.0
    %908 = vmatprep.subr.mxu0 0.0
    %909 = vmatpush1.msra.mxu0 0.0
    %910 = vmatprep.subr.mxu0 0.0
    %911 = vmatpush1.msra.mxu0 0.0
    %912 = vmatprep.subr.mxu0 0.0
    %913 = vmatpush1.msra.mxu0 0.0
    %914 = vmatprep.subr.mxu0 0.0
    %915 = vmatpush1.msra.mxu0 0.0
    %916 = vmatprep.subr.mxu0 0.0
    %917 = vmatpush1.msra.mxu0 0.0
    %918 = vmatprep.subr.mxu0 0.0
    %919 = vmatpush1.msra.mxu0 0.0
    %920 = vmatprep.subr.mxu0 0.0
    %921 = vmatpush1.msra.mxu0 0.0
    %922 = vmatprep.subr.mxu0 0.0
    %923 = vmatpush1.msra.mxu0 %v892
    %924 = vmatprep.subr.mxu0 0.0
    %925 = vmatpush1.msra.mxu0 %v891
    %926 = vmatprep.subr.mxu0 0.0
    %927 = vmatpush1.msra.mxu0 %v890
    %928 = vmatprep.subr.mxu0 0.0
    %929 = vmatpush1.msra.mxu0 %v889
    %930 = vmatprep.subr.mxu0 0.0
    %931 = vmatpush1.msra.mxu0 %v888
    %932 = vmatprep.subr.mxu0 0.0
    %933 = vmatpush1.msra.mxu0 %v887
    %934 = vmatprep.subr.mxu0 0.0
    %935 = vmatpush1.msra.mxu0 %v886
    %936 = vmatprep.subr.mxu0 0.0
    %937 = vmatpush1.msra.mxu0 %v885
    %938 = vmatprep.subr.mxu0 0.0
    %939 = vmatpush2.msra.mxu0 0.0
    %940 = vmatprep.subr.mxu0 0.0
    %941 = vmatpush2.msra.mxu0 0.0
    %942 = vmatprep.subr.mxu0 0.0
    %943 = vmatpush2.msra.mxu0 0.0
    %944 = vmatprep.subr.mxu0 0.0
    %945 = vmatpush2.msra.mxu0 0.0
    %946 = vmatprep.subr.mxu0 0.0
    %947 = vmatpush2.msra.mxu0 0.0
    %948 = vmatprep.subr.mxu0 0.0
    %949 = vmatpush2.msra.mxu0 0.0
    %950 = vmatprep.subr.mxu0 0.0
    %951 = vmatpush2.msra.mxu0 0.0
    %952 = vmatprep.subr.mxu0 0.0
    %953 = vmatpush2.msra.mxu0 0.0
    %954 = vmatprep.subr.mxu0 0.0
    %955 = vmatpush2.msra.mxu0 0.0
    %956 = vmatprep.subr.mxu0 0.0
    %957 = vmatpush2.msra.mxu0 0.0
    %958 = vmatprep.subr.mxu0 0.0
    %959 = vmatpush2.msra.mxu0 0.0
    %960 = vmatprep.subr.mxu0 0.0
    %961 = vmatpush2.msra.mxu0 0.0
    %962 = vmatprep.subr.mxu0 0.0
    %963 = vmatpush2.msra.mxu0 0.0
    %964 = vmatprep.subr.mxu0 0.0
    %965 = vmatpush2.msra.mxu0 0.0
    %966 = vmatprep.subr.mxu0 0.0
    %967 = vmatpush2.msra.mxu0 0.0
    %968 = vmatprep.subr.mxu0 0.0
    %969 = vmatpush2.msra.mxu0 0.0
    %970 = vmatprep.mubr.f32.mxu0 0.0
    %971 = vmatmul.mubr.f32.gmra.mxu0 %v901
    %v972 = vpop.f32.mrf.mxu0
    %v973 = vadd.f32 %v898, %v972
    %v974 = vpop.f32.mrf.mxu0
    %975 = vmatprep.mubr.f32.mxu0 0.0
    %976 = vmatmul.mubr.f32.gmra.mxu0 %v904
    %v977 = vpop.f32.mrf.mxu0
    %v978 = vadd.f32 %v898, %v977
    %v979 = vpop.f32.mrf.mxu0
    %980 = vdwg.mxu0
    %vm981 = vcmp.gt.f32.partialorder %v973, 0.0
    %vm982 = vcmp.gt.f32.partialorder %v978, 0.0
    %v983 = vmul.f32 %v973, 0.1
    %v984 = vmul.f32 %v978, 0.1
    %v985 = vsel %vm981, %v973, %v983
    %v986 = vsel %vm982, %v978, %v984
    %v987 = vld [vmem:[%s49] sm:$0xff]
    %v988 = vld [vmem:[%s49 + $0x8] sm:$0xff]
    %v989 = vld [vmem:[%s49 + $0x10] sm:$0xff]
    %v990 = vld [vmem:[%s49 + $0x18] sm:$0xff]
    %v991 = vld [vmem:[%s51] sm:$0x1]
    %v993 = vlaneseq
    %v994 = vshrl.u32 %v993, 7
    %v995 = vsub.s32 0, %v994
    %v996 = vrot.slane %v991, %v995
    %v999 = vsel %vm333, %v985, 0
    %v1002 = vsel %vm333, %v986, 0
    %1004 = vmatprep.subr.mxu0 0.0
    %1005 = vmatpush1.msra.mxu0 0.0
    %1006 = vmatprep.subr.mxu0 0.0
    %1007 = vmatpush1.msra.mxu0 0.0
    %1008 = vmatprep.subr.mxu0 0.0
    %1009 = vmatpush1.msra.mxu0 0.0
    %1010 = vmatprep.subr.mxu0 0.0
    %1011 = vmatpush1.msra.mxu0 0.0
    %1012 = vmatprep.subr.mxu0 0.0
    %1013 = vmatpush1.msra.mxu0 0.0
    %1014 = vmatprep.subr.mxu0 0.0
    %1015 = vmatpush1.msra.mxu0 0.0
    %1016 = vmatprep.subr.mxu0 0.0
    %1017 = vmatpush1.msra.mxu0 0.0
    %1018 = vmatprep.subr.mxu0 0.0
    %1019 = vmatpush1.msra.mxu0 0.0
    %1020 = vmatprep.subr.mxu0 0.0
    %1021 = vmatpush1.msra.mxu0 0.0
    %1022 = vmatprep.subr.mxu0 0.0
    %1023 = vmatpush1.msra.mxu0 0.0
    %1024 = vmatprep.subr.mxu0 0.0
    %1025 = vmatpush1.msra.mxu0 0.0
    %1026 = vmatprep.subr.mxu0 0.0
    %1027 = vmatpush1.msra.mxu0 0.0
    %1028 = vmatprep.subr.mxu0 0.0
    %1029 = vmatpush1.msra.mxu0 %v990
    %1030 = vmatprep.subr.mxu0 0.0
    %1031 = vmatpush1.msra.mxu0 %v989
    %1032 = vmatprep.subr.mxu0 0.0
    %1033 = vmatpush1.msra.mxu0 %v988
    %1034 = vmatprep.subr.mxu0 0.0
    %1035 = vmatpush1.msra.mxu0 %v987
    %1036 = vmatprep.subr.mxu0 0.0
    %1037 = vmatpush2.msra.mxu0 0.0
    %1038 = vmatprep.subr.mxu0 0.0
    %1039 = vmatpush2.msra.mxu0 0.0
    %1040 = vmatprep.subr.mxu0 0.0
    %1041 = vmatpush2.msra.mxu0 0.0
    %1042 = vmatprep.subr.mxu0 0.0
    %1043 = vmatpush2.msra.mxu0 0.0
    %1044 = vmatprep.subr.mxu0 0.0
    %1045 = vmatpush2.msra.mxu0 0.0
    %1046 = vmatprep.subr.mxu0 0.0
    %1047 = vmatpush2.msra.mxu0 0.0
    %1048 = vmatprep.subr.mxu0 0.0
    %1049 = vmatpush2.msra.mxu0 0.0
    %1050 = vmatprep.subr.mxu0 0.0
    %1051 = vmatpush2.msra.mxu0 0.0
    %1052 = vmatprep.subr.mxu0 0.0
    %1053 = vmatpush2.msra.mxu0 0.0
    %1054 = vmatprep.subr.mxu0 0.0
    %1055 = vmatpush2.msra.mxu0 0.0
    %1056 = vmatprep.subr.mxu0 0.0
    %1057 = vmatpush2.msra.mxu0 0.0
    %1058 = vmatprep.subr.mxu0 0.0
    %1059 = vmatpush2.msra.mxu0 0.0
    %1060 = vmatprep.subr.mxu0 0.0
    %1061 = vmatpush2.msra.mxu0 0.0
    %1062 = vmatprep.subr.mxu0 0.0
    %1063 = vmatpush2.msra.mxu0 0.0
    %1064 = vmatprep.subr.mxu0 0.0
    %1065 = vmatpush2.msra.mxu0 0.0
    %1066 = vmatprep.subr.mxu0 0.0
    %1067 = vmatpush2.msra.mxu0 0.0
    %1068 = vmatprep.mubr.f32.mxu0 0.0
    %1069 = vmatmul.mubr.f32.gmra.mxu0 %v999
    %v1070 = vpop.f32.mrf.mxu0
    %v1071 = vadd.f32 %v996, %v1070
    %v1072 = vpop.f32.mrf.mxu0
    %1073 = vmatprep.mubr.f32.mxu0 0.0
    %1074 = vmatmul.mubr.f32.gmra.mxu0 %v1002
    %v1075 = vpop.f32.mrf.mxu0
    %v1076 = vadd.f32 %v996, %v1075
    %v1077 = vpop.f32.mrf.mxu0
    %1078 = vdwg.mxu0
    %v1079 = vld [vmem:[%s53] sm:$0xff]
    %v1080 = vld [vmem:[%s53 + $0x8] sm:$0xff]
    %v1081 = vld [vmem:[%s53 + $0x10] sm:$0xff]
    %v1082 = vld [vmem:[%s53 + $0x18] sm:$0xff]
    %v1083 = vld [vmem:[%s55] sm:$0x1]
    %v1085 = vlaneseq
    %v1086 = vshrl.u32 %v1085, 7
    %v1087 = vsub.s32 0, %v1086
    %v1088 = vrot.slane %v1083, %v1087
    %1090 = vmatprep.subr.mxu0 0.0
    %1091 = vmatpush1.msra.mxu0 0.0
    %1092 = vmatprep.subr.mxu0 0.0
    %1093 = vmatpush1.msra.mxu0 0.0
    %1094 = vmatprep.subr.mxu0 0.0
    %1095 = vmatpush1.msra.mxu0 0.0
    %1096 = vmatprep.subr.mxu0 0.0
    %1097 = vmatpush1.msra.mxu0 0.0
    %1098 = vmatprep.subr.mxu0 0.0
    %1099 = vmatpush1.msra.mxu0 0.0
    %1100 = vmatprep.subr.mxu0 0.0
    %1101 = vmatpush1.msra.mxu0 0.0
    %1102 = vmatprep.subr.mxu0 0.0
    %1103 = vmatpush1.msra.mxu0 0.0
    %1104 = vmatprep.subr.mxu0 0.0
    %1105 = vmatpush1.msra.mxu0 0.0
    %1106 = vmatprep.subr.mxu0 0.0
    %1107 = vmatpush1.msra.mxu0 0.0
    %1108 = vmatprep.subr.mxu0 0.0
    %1109 = vmatpush1.msra.mxu0 0.0
    %1110 = vmatprep.subr.mxu0 0.0
    %1111 = vmatpush1.msra.mxu0 0.0
    %1112 = vmatprep.subr.mxu0 0.0
    %1113 = vmatpush1.msra.mxu0 0.0
    %1114 = vmatprep.subr.mxu0 0.0
    %1115 = vmatpush1.msra.mxu0 %v1082
    %1116 = vmatprep.subr.mxu0 0.0
    %1117 = vmatpush1.msra.mxu0 %v1081
    %1118 = vmatprep.subr.mxu0 0.0
    %1119 = vmatpush1.msra.mxu0 %v1080
    %1120 = vmatprep.subr.mxu0 0.0
    %1121 = vmatpush1.msra.mxu0 %v1079
    %1122 = vmatprep.subr.mxu0 0.0
    %1123 = vmatpush2.msra.mxu0 0.0
    %1124 = vmatprep.subr.mxu0 0.0
    %1125 = vmatpush2.msra.mxu0 0.0
    %1126 = vmatprep.subr.mxu0 0.0
    %1127 = vmatpush2.msra.mxu0 0.0
    %1128 = vmatprep.subr.mxu0 0.0
    %1129 = vmatpush2.msra.mxu0 0.0
    %1130 = vmatprep.subr.mxu0 0.0
    %1131 = vmatpush2.msra.mxu0 0.0
    %1132 = vmatprep.subr.mxu0 0.0
    %1133 = vmatpush2.msra.mxu0 0.0
    %1134 = vmatprep.subr.mxu0 0.0
    %1135 = vmatpush2.msra.mxu0 0.0
    %1136 = vmatprep.subr.mxu0 0.0
    %1137 = vmatpush2.msra.mxu0 0.0
    %1138 = vmatprep.subr.mxu0 0.0
    %1139 = vmatpush2.msra.mxu0 0.0
    %1140 = vmatprep.subr.mxu0 0.0
    %1141 = vmatpush2.msra.mxu0 0.0
    %1142 = vmatprep.subr.mxu0 0.0
    %1143 = vmatpush2.msra.mxu0 0.0
    %1144 = vmatprep.subr.mxu0 0.0
    %1145 = vmatpush2.msra.mxu0 0.0
    %1146 = vmatprep.subr.mxu0 0.0
    %1147 = vmatpush2.msra.mxu0 0.0
    %1148 = vmatprep.subr.mxu0 0.0
    %1149 = vmatpush2.msra.mxu0 0.0
    %1150 = vmatprep.subr.mxu0 0.0
    %1151 = vmatpush2.msra.mxu0 0.0
    %1152 = vmatprep.subr.mxu0 0.0
    %1153 = vmatpush2.msra.mxu0 0.0
    %1154 = vmatprep.mubr.f32.mxu0 0.0
    %1155 = vmatmul.mubr.f32.gmra.mxu0 %v999
    %v1156 = vpop.f32.mrf.mxu0
    %v1157 = vadd.f32 %v1088, %v1156
    %v1158 = vpop.f32.mrf.mxu0
    %1159 = vmatprep.mubr.f32.mxu0 0.0
    %1160 = vmatmul.mubr.f32.gmra.mxu0 %v1002
    %v1161 = vpop.f32.mrf.mxu0
    %v1162 = vadd.f32 %v1088, %v1161
    %v1163 = vpop.f32.mrf.mxu0
    %1164 = vdwg.mxu0
    %v1165 = vld [vmem:[%s15] sm:$0xff]
    %v1166 = vld [vmem:[%s15 + $0x8] sm:$0xff]
    %v1167 = vmul.f32 %v1157, 0.5
    %v1168 = vmul.f32 %v1162, 0.5
    %v1169 = vmul.f32 %v1167, 1.442695
    %v1170 = vpow.pop %v1169
    %v1171 = vmul.f32 %v1168, 1.442695
    %v1172 = vpow.pop %v1171
    %v1173 = vmul.f32 %v1165, %v1170
    %v1174 = vmul.f32 %v1166, %v1172
    %v1175 = vadd.f32 %v1071, %v1173
    %v1176 = vadd.f32 %v1076, %v1174
    %vm1177 = vcmask 64512
    %1178 = vst.msk [vmem:[#allocation5] sm:$0xff] %vm1177, %v1175
    %1179 = vst.msk [vmem:[#allocation5 + $0x8] sm:$0xff] %vm1177, %v1176
    %1180 = vst.msk [vmem:[%s61] sm:$0xff] %vm1177, %v1175
    %1181 = vst.msk [vmem:[%s61 + $0x8] sm:$0xff] %vm1177, %v1176
    %s1182 = scalar_lea.vmem %s61, 16
    %1183 = vst.msk [vmem:[%s1182] sm:$0xff] %vm1177, %v1071
    %1184 = vst.msk [vmem:[%s1182 + $0x8] sm:$0xff] %vm1177, %v1076
    %s1185 = scalar_lea.vmem %s61, 32
    %1186 = vst.msk [vmem:[%s1185] sm:$0xff] %vm1177, %v1157
    %1187 = vst.msk [vmem:[%s1185 + $0x8] sm:$0xff] %vm1177, %v1162
    %vm1188 = vcmask 58368
    %1189 = vst.msk [vmem:[#allocation6] sm:$0x3] %vm1188, 0.0
    loop: start=0, step=1, limit=16
    $region156: #{tpu_custom_call.1} parent=1 // loop_pre_header
      _
    $region157: #{tpu_custom_call.1} parent=1 // loop_header
      %s1191 = sphi 0, %s1195
      %p1192 = scmp.ge.s32.totalorder %s1191, 16
    $region158: #{tpu_custom_call.1} parent=1 // loop_header_branch
      %1194 = sbr.rel (%p1192) target = $region162
    $region159: #{tpu_custom_call.1} parent=1 // loop_body
      %s1196 = sld [smem:[#allocation12 + %s1191]]
      %s1197 = sld [smem:[#allocation15 + %s1196]]
      %s1198 = scalar_lea.vmem [#allocation6], %s1196
      %v1199 = vld [vmem:[%s1198] sm:$0x1]
      %s1200 = scalar_lea.vmem [#allocation5], %s1191
      %v1201 = vld [vmem:[%s1200] sm:$0x1]
      %v1202 = vstv %s1197
      %v1203 = vmul.f32 %v1202, %v1201
      %v1204 = vadd.f32 %v1199, %v1203
      %vm1205 = vcmask 57344
      %1206 = vst.msk [vmem:[%s1198] sm:$0x1] %vm1205, %v1204
    $region160: #{tpu_custom_call.1} parent=1 // loop_footer
      %s1195 = sadd.s32 1, %s1191
    $region161: #{tpu_custom_call.1} parent=1 // loop_footer_branch
      %1190 = sbr.rel target = $region157
    $region162: #{tpu_custom_call.1} parent=1 // loop_exit
      _
    %v1207 = vld [vmem:[#allocation6] sm:$0x3]
    %v1208 = vld [vmem:[%s57] sm:$0xff]
    %v1209 = vld [vmem:[%s59] sm:$0x1]
    %v1211 = vlaneseq
    %v1212 = vshrl.u32 %v1211, 7
    %v1213 = vsub.s32 0, %v1212
    %v1214 = vrot.slane %v1209, %v1213
    %v1217 = vsel %vm1177, %v1207, 0
    %1219 = vmatprep.subr.mxu0 0.0
    %1220 = vmatpush1.msra.mxu0 0.0
    %1221 = vmatprep.subr.mxu0 0.0
    %1222 = vmatpush1.msra.mxu0 0.0
    %1223 = vmatprep.subr.mxu0 0.0
    %1224 = vmatpush1.msra.mxu0 0.0
    %1225 = vmatprep.subr.mxu0 0.0
    %1226 = vmatpush1.msra.mxu0 0.0
    %1227 = vmatprep.subr.mxu0 0.0
    %1228 = vmatpush1.msra.mxu0 0.0
    %1229 = vmatprep.subr.mxu0 0.0
    %1230 = vmatpush1.msra.mxu0 0.0
    %1231 = vmatprep.subr.mxu0 0.0
    %1232 = vmatpush1.msra.mxu0 0.0
    %1233 = vmatprep.subr.mxu0 0.0
    %1234 = vmatpush1.msra.mxu0 0.0
    %1235 = vmatprep.subr.mxu0 0.0
    %1236 = vmatpush1.msra.mxu0 0.0
    %1237 = vmatprep.subr.mxu0 0.0
    %1238 = vmatpush1.msra.mxu0 0.0
    %1239 = vmatprep.subr.mxu0 0.0
    %1240 = vmatpush1.msra.mxu0 0.0
    %1241 = vmatprep.subr.mxu0 0.0
    %1242 = vmatpush1.msra.mxu0 0.0
    %1243 = vmatprep.subr.mxu0 0.0
    %1244 = vmatpush1.msra.mxu0 0.0
    %1245 = vmatprep.subr.mxu0 0.0
    %1246 = vmatpush1.msra.mxu0 0.0
    %1247 = vmatprep.subr.mxu0 0.0
    %1248 = vmatpush1.msra.mxu0 0.0
    %1249 = vmatprep.subr.mxu0 0.0
    %1250 = vmatpush1.msra.mxu0 %v1208
    %1251 = vmatprep.subr.mxu0 0.0
    %1252 = vmatpush2.msra.mxu0 0.0
    %1253 = vmatprep.subr.mxu0 0.0
    %1254 = vmatpush2.msra.mxu0 0.0
    %1255 = vmatprep.subr.mxu0 0.0
    %1256 = vmatpush2.msra.mxu0 0.0
    %1257 = vmatprep.subr.mxu0 0.0
    %1258 = vmatpush2.msra.mxu0 0.0
    %1259 = vmatprep.subr.mxu0 0.0
    %1260 = vmatpush2.msra.mxu0 0.0
    %1261 = vmatprep.subr.mxu0 0.0
    %1262 = vmatpush2.msra.mxu0 0.0
    %1263 = vmatprep.subr.mxu0 0.0
    %1264 = vmatpush2.msra.mxu0 0.0
    %1265 = vmatprep.subr.mxu0 0.0
    %1266 = vmatpush2.msra.mxu0 0.0
    %1267 = vmatprep.subr.mxu0 0.0
    %1268 = vmatpush2.msra.mxu0 0.0
    %1269 = vmatprep.subr.mxu0 0.0
    %1270 = vmatpush2.msra.mxu0 0.0
    %1271 = vmatprep.subr.mxu0 0.0
    %1272 = vmatpush2.msra.mxu0 0.0
    %1273 = vmatprep.subr.mxu0 0.0
    %1274 = vmatpush2.msra.mxu0 0.0
    %1275 = vmatprep.subr.mxu0 0.0
    %1276 = vmatpush2.msra.mxu0 0.0
    %1277 = vmatprep.subr.mxu0 0.0
    %1278 = vmatpush2.msra.mxu0 0.0
    %1279 = vmatprep.subr.mxu0 0.0
    %1280 = vmatpush2.msra.mxu0 0.0
    %1281 = vmatprep.subr.mxu0 0.0
    %1282 = vmatpush2.msra.mxu0 0.0
    %1283 = vmatprep.mubr.f32.mxu0 0.0
    %1284 = vmatmul.mubr.f32.gmra.mxu0 %v1217
    %v1285 = vpop.f32.mrf.mxu0
    %v1286 = vadd.f32 %v1214, %v1285
    %v1287 = vpop.f32.mrf.mxu0
    %1288 = vdwg.mxu0
    %vm1289 = vcmask 17408
    %1290 = vst.msk [vmem:[#allocation16] sm:$0x3] %vm1289, %v1286
    // Predicated region
    $region163: #{tpu_custom_call.1} parent=1 // pred_check
      _
    $region164: #{tpu_custom_call.1} parent=1 // pred_check_branch
      %1292 = sbr.rel (0) target = $region166
    $region165: #{tpu_custom_call.1} parent=1 // pred_region
      _
    $region166: #{tpu_custom_call.1} parent=1 // pred_fallthru
      _
    // Predicated region
    $region167: #{tpu_custom_call.1} parent=1 // pred_check
      _
    $region168: #{tpu_custom_call.1} parent=1 // pred_check_branch
      %1294 = sbr.rel (0) target = $region170
    $region169: #{tpu_custom_call.1} parent=1 // pred_region
      %s1296 = ssub.s32 32, 32
      %1297 = vsyncadd [#allocation8], %s1296
      %s1299 = sshll.u32 [#allocation16], 4
      %s1300 = int_to_ptr.vmem [resolvable:$true] %s1299
      %1302 = dma.vmem_to_hbm [thread:$0]  %s1300, 32, %s63, [#allocation8]
    $region170: #{tpu_custom_call.1} parent=1 // pred_fallthru
      _
    // Predicated region
    $region171: #{tpu_custom_call.1} parent=1 // pred_check
      _
    $region172: #{tpu_custom_call.1} parent=1 // pred_check_branch
      %1304 = sbr.rel (0) target = $region174
    $region173: #{tpu_custom_call.1} parent=1 // pred_region
      _
    $region174: #{tpu_custom_call.1} parent=1 // pred_fallthru
      _
    // Predicated region
    $region175: #{tpu_custom_call.1} parent=1 // pred_check
      _
    $region176: #{tpu_custom_call.1} parent=1 // pred_check_branch
      %1306 = sbr.rel (0) target = $region178
    $region177: #{tpu_custom_call.1} parent=1 // pred_region
      %1307 = dma.done [#allocation8], 32
    $region178: #{tpu_custom_call.1} parent=1 // pred_fallthru
      _
    %1308 = vsyncpa [#allocation8], 1
    %1309 = vsyncpa [#allocation9], 1
    %1310 = vsyncpa [#allocation11], 1
    %1311 = vsyncpa [#allocation14], 1

</llo_original>
